<compile_context>
chip_gen: v6e
topology: v6e:2x2x1
jax: 0.10.0
libtpu: 0.0.40
codegen_flags: <defaults>
</compile_context>

<pallas_src>
import functools

import jax
import jax.numpy as jnp
from jax import lax
from jax.experimental import pallas as pl
from jax.experimental.pallas import tpu as pltpu


def _lstm_head_kernel(xw_ref, w_hh_ref, w_head_ref, b_head_ref, head_ref, *, seq_len):
    """xw_ref: (T, B, 4H) precomputed x*W_ih^T + b; head_ref: (B, P) lane-dense."""
    H = w_hh_ref.shape[0]
    B = xw_ref.shape[1]

    w_hh = w_hh_ref[...]                                   # (H, 4H), resident across loop

    def step(t, carry):
        h, c = carry                                       # vreg-resident state
        # gates laid out as [i | f | g | o] along the 4H lane axis (PyTorch order)
        gates = xw_ref[t] + jnp.dot(h, w_hh, preferred_element_type=jnp.float32)  # (B, 4H)
        # Two whole-vreg EUP pushes instead of four sub-slice ones.
        sig = jax.nn.sigmoid(gates)
        tng = jnp.tanh(gates)
        i_g = sig[:, 0 * H:1 * H]
        f_g = sig[:, 1 * H:2 * H]
        g_g = tng[:, 2 * H:3 * H]
        o_g = sig[:, 3 * H:4 * H]
        c_new = f_g * c + i_g * g_g
        h_new = o_g * jnp.tanh(c_new)
        return h_new, c_new

    init = (jnp.zeros((B, H), jnp.float32),                # h0 (PyTorch default zeros)
            jnp.zeros((B, H), jnp.float32))                # c0
    h_last, _ = lax.fori_loop(0, seq_len, step, init, unroll=True)

    # Fused heads: column 0 = premium, columns 1..T-1 = trade, rest zero-pad.
    head_ref[...] = (jnp.dot(h_last, w_head_ref[...], preferred_element_type=jnp.float32)
                     + b_head_ref[...])


def portfolio_lstm_forward(x, params, *, trade_limit):
    """x: (B, T, 1) float32 (batch_first, like the PyTorch module)."""
    B, T, _ = x.shape
    P = params["w_head"].shape[1]                          # padded head width (mult of 128)

    # Pad batch up to a multiple of 8 so the (B, 4H) gates tile fills whole sublanes.
    B_pad = max(8, ((B + 7) // 8) * 8)
    if B_pad != B:
        x = jnp.pad(x, ((0, B_pad - B), (0, 0), (0, 0)))

    # Hoist the input projection and fused bias out of the serial recurrence:
    # xw[t, b, :] = x[b, t, 0] * W_ih^T + (b_ih + b_hh)   -> (T, B_pad, 4H)
    xw = jnp.transpose(x, (1, 0, 2)) * params["w_ih"][None] + params["b"][None]

    kernel = functools.partial(_lstm_head_kernel, seq_len=T)
    head = pl.pallas_call(
        kernel,
        out_shape=jax.ShapeDtypeStruct((B_pad, P), jnp.float32),
        compiler_params=pltpu.CompilerParams(vmem_limit_bytes=32 * 1024 * 1024),
    )(xw, params["w_hh"], params["w_head"], params["b_head"])

    prem = jnp.maximum(head[:B, 0:1], 0.0)                               # ReLU
    trade = jnp.clip(head[:B, 1:T], -trade_limit, trade_limit)           # clamp
    return prem, trade


def init_params(key, *, total_days, hidden_size):
    """Deterministic synthetic parameters, laid out for `h @ W` matmuls."""
    H, T = hidden_size, total_days
    ks = jax.random.split(key, 8)
    scale = 0.2
    w_ih = scale * jax.random.normal(ks[0], (1, 4 * H), jnp.float32)       # LSTM W_ih^T
    w_hh = scale * jax.random.normal(ks[1], (H, 4 * H), jnp.float32)       # LSTM W_hh^T
    b_ih = scale * jax.random.normal(ks[2], (1, 4 * H), jnp.float32)
    b_hh = scale * jax.random.normal(ks[3], (1, 4 * H), jnp.float32)
    w_prem = scale * jax.random.normal(ks[4], (H, 1), jnp.float32)         # premium Linear^T
    b_prem = scale * jax.random.normal(ks[5], (1, 1), jnp.float32)
    w_trade = scale * jax.random.normal(ks[6], (H, T - 1), jnp.float32)    # trade Linear^T
    b_trade = scale * jax.random.normal(ks[7], (1, T - 1), jnp.float32)

    # Fused, lane-dense head weight: [premium | trade | zero-pad] -> width P (mult of 128)
    P = max(128, ((T + 127) // 128) * 128)
    w_head = jnp.concatenate(
        [w_prem, w_trade, jnp.zeros((H, P - T), jnp.float32)], axis=1)     # (H, P)
    b_head = jnp.concatenate(
        [b_prem, b_trade, jnp.zeros((1, P - T), jnp.float32)], axis=1)     # (1, P)

    return {
        "w_ih": w_ih, "w_hh": w_hh, "b": b_ih + b_hh,
        "w_prem": w_prem, "b_prem": b_prem,
        "w_trade": w_trade, "b_trade": b_trade,
        "w_head": w_head, "b_head": b_head,
    }


def reference_forward(x, params, *, trade_limit):
    """Pure-JAX reference of the PyTorch forward (for correctness check)."""
    B, T, _ = x.shape
    H = params["w_hh"].shape[0]
    h = jnp.zeros((B, H), jnp.float32)
    c = jnp.zeros((B, H), jnp.float32)

    def step(carry, x_t):
        h, c = carry
        gates = x_t * params["w_ih"] + h @ params["w_hh"] + params["b"]
        i = jax.nn.sigmoid(gates[:, 0 * H:1 * H])
        f = jax.nn.sigmoid(gates[:, 1 * H:2 * H])
        g = jnp.tanh(gates[:, 2 * H:3 * H])
        o = jax.nn.sigmoid(gates[:, 3 * H:4 * H])
        c = f * c + i * g
        h = o * jnp.tanh(c)
        return (h, c), None

    (h, c), _ = lax.scan(step, (h, c), jnp.transpose(x, (1, 0, 2)))
    prem = jnp.maximum(h @ params["w_prem"] + params["b_prem"], 0.0)
    trade = jnp.clip(h @ params["w_trade"] + params["b_trade"],
                     -trade_limit, trade_limit)
    return prem, trade


if __name__ == "__main__":
    # Small shapes consistent with the module:
    #   batch=4 assets, total_days (sequence length) = 16, hidden = 32, trade_limit = 10
    B, T, H = 4, 16, 32
    TRADE_LIMIT = 10.0

    key = jax.random.PRNGKey(0)
    k_x, k_p = jax.random.split(key)
    x = jax.random.normal(k_x, (B, T, 1), jnp.float32)   # (batch, seq, 1) like PBL_Dataset rows
    params = init_params(k_p, total_days=T, hidden_size=H)

    prem, trade = jax.block_until_ready(
        portfolio_lstm_forward(x, params, trade_limit=TRADE_LIMIT))

    prem_ref, trade_ref = reference_forward(x, params, trade_limit=TRADE_LIMIT)
    assert prem.shape == (B, 1) and trade.shape == (B, T - 1)
    assert jnp.allclose(prem, prem_ref, atol=1e-4, rtol=1e-4)
    assert jnp.allclose(trade, trade_ref, atol=1e-4, rtol=1e-4)

    print("KERNEL_OK")
</pallas_src>

<mosaic_0001>
module attributes {stable_mosaic.version = 11 : i64} {
  func.func @_lstm_head_kernel(%arg0: memref<16x8x128xf32, #tpu.memory_space<vmem>>, %arg1: memref<32x128xf32, #tpu.memory_space<vmem>>, %arg2: memref<32x128xf32, #tpu.memory_space<vmem>>, %arg3: memref<1x128xf32, #tpu.memory_space<vmem>>, %arg4: memref<8x128xf32, #tpu.memory_space<vmem>>) attributes {dimension_semantics = [], scalar_prefetch = 0 : i64, scratch_operands = 0 : i64, tpu.core_type = #tpu.core_type<tc>} {
    %c0 = arith.constant 0 : index
    %c0_0 = arith.constant 0 : index
    %0 = vector.load %arg1[%c0, %c0_0] : memref<32x128xf32, #tpu.memory_space<vmem>>, vector<32x128xf32>
    %cst = arith.constant 0.000000e+00 : f32
    %1 = vector.broadcast %cst : f32 to vector<8x32xf32>
    %cst_1 = arith.constant 0.000000e+00 : f32
    %2 = vector.broadcast %cst_1 : f32 to vector<8x32xf32>
    %c0_i32 = arith.constant 0 : i32
    %3 = arith.index_cast %c0_i32 : i32 to index
    %c0_2 = arith.constant 0 : index
    %c0_3 = arith.constant 0 : index
    %4 = vector.load %arg0[%3, %c0_2, %c0_3] : memref<16x8x128xf32, #tpu.memory_space<vmem>>, vector<1x8x128xf32>
    %5 = vector.shape_cast %4 : vector<1x8x128xf32> to vector<8x128xf32>
    %cst_4 = arith.constant dense<0.000000e+00> : vector<8x128xf32>
    %6 = tpu.matmul %1, %0, %cst_4 {dimension_numbers = #tpu.dot_dimension_numbers<[1], [0], [0], [1], [0, 0, 1, 1], [], []>} : vector<8x32xf32>, vector<32x128xf32>, vector<8x128xf32> -> vector<8x128xf32>
    %7 = arith.addf %5, %6 : vector<8x128xf32>
    %8 = arith.negf %7 : vector<8x128xf32>
    %9 = math.exp %8 : vector<8x128xf32>
    %cst_5 = arith.constant 1.000000e+00 : f32
    %10 = vector.broadcast %cst_5 : f32 to vector<8x128xf32>
    %11 = arith.addf %10, %9 : vector<8x128xf32>
    %12 = arith.divf %10, %11 : vector<8x128xf32>
    %13 = math.tanh %7 : vector<8x128xf32>
    %14 = vector.extract_strided_slice %12 {offsets = [0, 0], sizes = [8, 32], strides = [1, 1]} : vector<8x128xf32> to vector<8x32xf32>
    %15 = vector.extract_strided_slice %12 {offsets = [0, 32], sizes = [8, 32], strides = [1, 1]} : vector<8x128xf32> to vector<8x32xf32>
    %16 = vector.extract_strided_slice %13 {offsets = [0, 64], sizes = [8, 32], strides = [1, 1]} : vector<8x128xf32> to vector<8x32xf32>
    %17 = vector.extract_strided_slice %12 {offsets = [0, 96], sizes = [8, 32], strides = [1, 1]} : vector<8x128xf32> to vector<8x32xf32>
    %18 = arith.mulf %15, %2 : vector<8x32xf32>
    %19 = arith.mulf %14, %16 : vector<8x32xf32>
    %20 = arith.addf %18, %19 : vector<8x32xf32>
    %21 = math.tanh %20 : vector<8x32xf32>
    %22 = arith.mulf %17, %21 : vector<8x32xf32>
    %c1_i32 = arith.constant 1 : i32
    %23 = arith.index_cast %c1_i32 : i32 to index
    %c0_6 = arith.constant 0 : index
    %c0_7 = arith.constant 0 : index
    %24 = vector.load %arg0[%23, %c0_6, %c0_7] : memref<16x8x128xf32, #tpu.memory_space<vmem>>, vector<1x8x128xf32>
    %25 = vector.shape_cast %24 : vector<1x8x128xf32> to vector<8x128xf32>
    %cst_8 = arith.constant dense<0.000000e+00> : vector<8x128xf32>
    %26 = tpu.matmul %22, %0, %cst_8 {dimension_numbers = #tpu.dot_dimension_numbers<[1], [0], [0], [1], [0, 0, 1, 1], [], []>} : vector<8x32xf32>, vector<32x128xf32>, vector<8x128xf32> -> vector<8x128xf32>
    %27 = arith.addf %25, %26 : vector<8x128xf32>
    %28 = arith.negf %27 : vector<8x128xf32>
    %29 = math.exp %28 : vector<8x128xf32>
    %cst_9 = arith.constant 1.000000e+00 : f32
    %30 = vector.broadcast %cst_9 : f32 to vector<8x128xf32>
    %31 = arith.addf %30, %29 : vector<8x128xf32>
    %32 = arith.divf %30, %31 : vector<8x128xf32>
    %33 = math.tanh %27 : vector<8x128xf32>
    %34 = vector.extract_strided_slice %32 {offsets = [0, 0], sizes = [8, 32], strides = [1, 1]} : vector<8x128xf32> to vector<8x32xf32>
    %35 = vector.extract_strided_slice %32 {offsets = [0, 32], sizes = [8, 32], strides = [1, 1]} : vector<8x128xf32> to vector<8x32xf32>
    %36 = vector.extract_strided_slice %33 {offsets = [0, 64], sizes = [8, 32], strides = [1, 1]} : vector<8x128xf32> to vector<8x32xf32>
    %37 = vector.extract_strided_slice %32 {offsets = [0, 96], sizes = [8, 32], strides = [1, 1]} : vector<8x128xf32> to vector<8x32xf32>
    %38 = arith.mulf %35, %20 : vector<8x32xf32>
    %39 = arith.mulf %34, %36 : vector<8x32xf32>
    %40 = arith.addf %38, %39 : vector<8x32xf32>
    %41 = math.tanh %40 : vector<8x32xf32>
    %42 = arith.mulf %37, %41 : vector<8x32xf32>
    %c2_i32 = arith.constant 2 : i32
    %43 = arith.index_cast %c2_i32 : i32 to index
    %c0_10 = arith.constant 0 : index
    %c0_11 = arith.constant 0 : index
    %44 = vector.load %arg0[%43, %c0_10, %c0_11] : memref<16x8x128xf32, #tpu.memory_space<vmem>>, vector<1x8x128xf32>
    %45 = vector.shape_cast %44 : vector<1x8x128xf32> to vector<8x128xf32>
    %cst_12 = arith.constant dense<0.000000e+00> : vector<8x128xf32>
    %46 = tpu.matmul %42, %0, %cst_12 {dimension_numbers = #tpu.dot_dimension_numbers<[1], [0], [0], [1], [0, 0, 1, 1], [], []>} : vector<8x32xf32>, vector<32x128xf32>, vector<8x128xf32> -> vector<8x128xf32>
    %47 = arith.addf %45, %46 : vector<8x128xf32>
    %48 = arith.negf %47 : vector<8x128xf32>
    %49 = math.exp %48 : vector<8x128xf32>
    %cst_13 = arith.constant 1.000000e+00 : f32
    %50 = vector.broadcast %cst_13 : f32 to vector<8x128xf32>
    %51 = arith.addf %50, %49 : vector<8x128xf32>
    %52 = arith.divf %50, %51 : vector<8x128xf32>
    %53 = math.tanh %47 : vector<8x128xf32>
    %54 = vector.extract_strided_slice %52 {offsets = [0, 0], sizes = [8, 32], strides = [1, 1]} : vector<8x128xf32> to vector<8x32xf32>
    %55 = vector.extract_strided_slice %52 {offsets = [0, 32], sizes = [8, 32], strides = [1, 1]} : vector<8x128xf32> to vector<8x32xf32>
    %56 = vector.extract_strided_slice %53 {offsets = [0, 64], sizes = [8, 32], strides = [1, 1]} : vector<8x128xf32> to vector<8x32xf32>
    %57 = vector.extract_strided_slice %52 {offsets = [0, 96], sizes = [8, 32], strides = [1, 1]} : vector<8x128xf32> to vector<8x32xf32>
    %58 = arith.mulf %55, %40 : vector<8x32xf32>
    %59 = arith.mulf %54, %56 : vector<8x32xf32>
    %60 = arith.addf %58, %59 : vector<8x32xf32>
    %61 = math.tanh %60 : vector<8x32xf32>
    %62 = arith.mulf %57, %61 : vector<8x32xf32>
    %c3_i32 = arith.constant 3 : i32
    %63 = arith.index_cast %c3_i32 : i32 to index
    %c0_14 = arith.constant 0 : index
    %c0_15 = arith.constant 0 : index
    %64 = vector.load %arg0[%63, %c0_14, %c0_15] : memref<16x8x128xf32, #tpu.memory_space<vmem>>, vector<1x8x128xf32>
    %65 = vector.shape_cast %64 : vector<1x8x128xf32> to vector<8x128xf32>
    %cst_16 = arith.constant dense<0.000000e+00> : vector<8x128xf32>
    %66 = tpu.matmul %62, %0, %cst_16 {dimension_numbers = #tpu.dot_dimension_numbers<[1], [0], [0], [1], [0, 0, 1, 1], [], []>} : vector<8x32xf32>, vector<32x128xf32>, vector<8x128xf32> -> vector<8x128xf32>
    %67 = arith.addf %65, %66 : vector<8x128xf32>
    %68 = arith.negf %67 : vector<8x128xf32>
    %69 = math.exp %68 : vector<8x128xf32>
    %cst_17 = arith.constant 1.000000e+00 : f32
    %70 = vector.broadcast %cst_17 : f32 to vector<8x128xf32>
    %71 = arith.addf %70, %69 : vector<8x128xf32>
    %72 = arith.divf %70, %71 : vector<8x128xf32>
    %73 = math.tanh %67 : vector<8x128xf32>
    %74 = vector.extract_strided_slice %72 {offsets = [0, 0], sizes = [8, 32], strides = [1, 1]} : vector<8x128xf32> to vector<8x32xf32>
    %75 = vector.extract_strided_slice %72 {offsets = [0, 32], sizes = [8, 32], strides = [1, 1]} : vector<8x128xf32> to vector<8x32xf32>
    %76 = vector.extract_strided_slice %73 {offsets = [0, 64], sizes = [8, 32], strides = [1, 1]} : vector<8x128xf32> to vector<8x32xf32>
    %77 = vector.extract_strided_slice %72 {offsets = [0, 96], sizes = [8, 32], strides = [1, 1]} : vector<8x128xf32> to vector<8x32xf32>
    %78 = arith.mulf %75, %60 : vector<8x32xf32>
    %79 = arith.mulf %74, %76 : vector<8x32xf32>
    %80 = arith.addf %78, %79 : vector<8x32xf32>
    %81 = math.tanh %80 : vector<8x32xf32>
    %82 = arith.mulf %77, %81 : vector<8x32xf32>
    %c4_i32 = arith.constant 4 : i32
    %83 = arith.index_cast %c4_i32 : i32 to index
    %c0_18 = arith.constant 0 : index
    %c0_19 = arith.constant 0 : index
    %84 = vector.load %arg0[%83, %c0_18, %c0_19] : memref<16x8x128xf32, #tpu.memory_space<vmem>>, vector<1x8x128xf32>
    %85 = vector.shape_cast %84 : vector<1x8x128xf32> to vector<8x128xf32>
    %cst_20 = arith.constant dense<0.000000e+00> : vector<8x128xf32>
    %86 = tpu.matmul %82, %0, %cst_20 {dimension_numbers = #tpu.dot_dimension_numbers<[1], [0], [0], [1], [0, 0, 1, 1], [], []>} : vector<8x32xf32>, vector<32x128xf32>, vector<8x128xf32> -> vector<8x128xf32>
    %87 = arith.addf %85, %86 : vector<8x128xf32>
    %88 = arith.negf %87 : vector<8x128xf32>
    %89 = math.exp %88 : vector<8x128xf32>
    %cst_21 = arith.constant 1.000000e+00 : f32
    %90 = vector.broadcast %cst_21 : f32 to vector<8x128xf32>
    %91 = arith.addf %90, %89 : vector<8x128xf32>
    %92 = arith.divf %90, %91 : vector<8x128xf32>
    %93 = math.tanh %87 : vector<8x128xf32>
    %94 = vector.extract_strided_slice %92 {offsets = [0, 0], sizes = [8, 32], strides = [1, 1]} : vector<8x128xf32> to vector<8x32xf32>
    %95 = vector.extract_strided_slice %92 {offsets = [0, 32], sizes = [8, 32], strides = [1, 1]} : vector<8x128xf32> to vector<8x32xf32>
    %96 = vector.extract_strided_slice %93 {offsets = [0, 64], sizes = [8, 32], strides = [1, 1]} : vector<8x128xf32> to vector<8x32xf32>
    %97 = vector.extract_strided_slice %92 {offsets = [0, 96], sizes = [8, 32], strides = [1, 1]} : vector<8x128xf32> to vector<8x32xf32>
    %98 = arith.mulf %95, %80 : vector<8x32xf32>
    %99 = arith.mulf %94, %96 : vector<8x32xf32>
    %100 = arith.addf %98, %99 : vector<8x32xf32>
    %101 = math.tanh %100 : vector<8x32xf32>
    %102 = arith.mulf %97, %101 : vector<8x32xf32>
    %c5_i32 = arith.constant 5 : i32
    %103 = arith.index_cast %c5_i32 : i32 to index
    %c0_22 = arith.constant 0 : index
    %c0_23 = arith.constant 0 : index
    %104 = vector.load %arg0[%103, %c0_22, %c0_23] : memref<16x8x128xf32, #tpu.memory_space<vmem>>, vector<1x8x128xf32>
    %105 = vector.shape_cast %104 : vector<1x8x128xf32> to vector<8x128xf32>
    %cst_24 = arith.constant dense<0.000000e+00> : vector<8x128xf32>
    %106 = tpu.matmul %102, %0, %cst_24 {dimension_numbers = #tpu.dot_dimension_numbers<[1], [0], [0], [1], [0, 0, 1, 1], [], []>} : vector<8x32xf32>, vector<32x128xf32>, vector<8x128xf32> -> vector<8x128xf32>
    %107 = arith.addf %105, %106 : vector<8x128xf32>
    %108 = arith.negf %107 : vector<8x128xf32>
    %109 = math.exp %108 : vector<8x128xf32>
    %cst_25 = arith.constant 1.000000e+00 : f32
    %110 = vector.broadcast %cst_25 : f32 to vector<8x128xf32>
    %111 = arith.addf %110, %109 : vector<8x128xf32>
    %112 = arith.divf %110, %111 : vector<8x128xf32>
    %113 = math.tanh %107 : vector<8x128xf32>
    %114 = vector.extract_strided_slice %112 {offsets = [0, 0], sizes = [8, 32], strides = [1, 1]} : vector<8x128xf32> to vector<8x32xf32>
    %115 = vector.extract_strided_slice %112 {offsets = [0, 32], sizes = [8, 32], strides = [1, 1]} : vector<8x128xf32> to vector<8x32xf32>
    %116 = vector.extract_strided_slice %113 {offsets = [0, 64], sizes = [8, 32], strides = [1, 1]} : vector<8x128xf32> to vector<8x32xf32>
    %117 = vector.extract_strided_slice %112 {offsets = [0, 96], sizes = [8, 32], strides = [1, 1]} : vector<8x128xf32> to vector<8x32xf32>
    %118 = arith.mulf %115, %100 : vector<8x32xf32>
    %119 = arith.mulf %114, %116 : vector<8x32xf32>
    %120 = arith.addf %118, %119 : vector<8x32xf32>
    %121 = math.tanh %120 : vector<8x32xf32>
    %122 = arith.mulf %117, %121 : vector<8x32xf32>
    %c6_i32 = arith.constant 6 : i32
    %123 = arith.index_cast %c6_i32 : i32 to index
    %c0_26 = arith.constant 0 : index
    %c0_27 = arith.constant 0 : index
    %124 = vector.load %arg0[%123, %c0_26, %c0_27] : memref<16x8x128xf32, #tpu.memory_space<vmem>>, vector<1x8x128xf32>
    %125 = vector.shape_cast %124 : vector<1x8x128xf32> to vector<8x128xf32>
    %cst_28 = arith.constant dense<0.000000e+00> : vector<8x128xf32>
    %126 = tpu.matmul %122, %0, %cst_28 {dimension_numbers = #tpu.dot_dimension_numbers<[1], [0], [0], [1], [0, 0, 1, 1], [], []>} : vector<8x32xf32>, vector<32x128xf32>, vector<8x128xf32> -> vector<8x128xf32>
    %127 = arith.addf %125, %126 : vector<8x128xf32>
    %128 = arith.negf %127 : vector<8x128xf32>
    %129 = math.exp %128 : vector<8x128xf32>
    %cst_29 = arith.constant 1.000000e+00 : f32
    %130 = vector.broadcast %cst_29 : f32 to vector<8x128xf32>
    %131 = arith.addf %130, %129 : vector<8x128xf32>
    %132 = arith.divf %130, %131 : vector<8x128xf32>
    %133 = math.tanh %127 : vector<8x128xf32>
    %134 = vector.extract_strided_slice %132 {offsets = [0, 0], sizes = [8, 32], strides = [1, 1]} : vector<8x128xf32> to vector<8x32xf32>
    %135 = vector.extract_strided_slice %132 {offsets = [0, 32], sizes = [8, 32], strides = [1, 1]} : vector<8x128xf32> to vector<8x32xf32>
    %136 = vector.extract_strided_slice %133 {offsets = [0, 64], sizes = [8, 32], strides = [1, 1]} : vector<8x128xf32> to vector<8x32xf32>
    %137 = vector.extract_strided_slice %132 {offsets = [0, 96], sizes = [8, 32], strides = [1, 1]} : vector<8x128xf32> to vector<8x32xf32>
    %138 = arith.mulf %135, %120 : vector<8x32xf32>
    %139 = arith.mulf %134, %136 : vector<8x32xf32>
    %140 = arith.addf %138, %139 : vector<8x32xf32>
    %141 = math.tanh %140 : vector<8x32xf32>
    %142 = arith.mulf %137, %141 : vector<8x32xf32>
    %c7_i32 = arith.constant 7 : i32
    %143 = arith.index_cast %c7_i32 : i32 to index
    %c0_30 = arith.constant 0 : index
    %c0_31 = arith.constant 0 : index
    %144 = vector.load %arg0[%143, %c0_30, %c0_31] : memref<16x8x128xf32, #tpu.memory_space<vmem>>, vector<1x8x128xf32>
    %145 = vector.shape_cast %144 : vector<1x8x128xf32> to vector<8x128xf32>
    %cst_32 = arith.constant dense<0.000000e+00> : vector<8x128xf32>
    %146 = tpu.matmul %142, %0, %cst_32 {dimension_numbers = #tpu.dot_dimension_numbers<[1], [0], [0], [1], [0, 0, 1, 1], [], []>} : vector<8x32xf32>, vector<32x128xf32>, vector<8x128xf32> -> vector<8x128xf32>
    %147 = arith.addf %145, %146 : vector<8x128xf32>
    %148 = arith.negf %147 : vector<8x128xf32>
    %149 = math.exp %148 : vector<8x128xf32>
    %cst_33 = arith.constant 1.000000e+00 : f32
    %150 = vector.broadcast %cst_33 : f32 to vector<8x128xf32>
    %151 = arith.addf %150, %149 : vector<8x128xf32>
    %152 = arith.divf %150, %151 : vector<8x128xf32>
    %153 = math.tanh %147 : vector<8x128xf32>
    %154 = vector.extract_strided_slice %152 {offsets = [0, 0], sizes = [8, 32], strides = [1, 1]} : vector<8x128xf32> to vector<8x32xf32>
    %155 = vector.extract_strided_slice %152 {offsets = [0, 32], sizes = [8, 32], strides = [1, 1]} : vector<8x128xf32> to vector<8x32xf32>
    %156 = vector.extract_strided_slice %153 {offsets = [0, 64], sizes = [8, 32], strides = [1, 1]} : vector<8x128xf32> to vector<8x32xf32>
    %157 = vector.extract_strided_slice %152 {offsets = [0, 96], sizes = [8, 32], strides = [1, 1]} : vector<8x128xf32> to vector<8x32xf32>
    %158 = arith.mulf %155, %140 : vector<8x32xf32>
    %159 = arith.mulf %154, %156 : vector<8x32xf32>
    %160 = arith.addf %158, %159 : vector<8x32xf32>
    %161 = math.tanh %160 : vector<8x32xf32>
    %162 = arith.mulf %157, %161 : vector<8x32xf32>
    %c8_i32 = arith.constant 8 : i32
    %163 = arith.index_cast %c8_i32 : i32 to index
    %c0_34 = arith.constant 0 : index
    %c0_35 = arith.constant 0 : index
    %164 = vector.load %arg0[%163, %c0_34, %c0_35] : memref<16x8x128xf32, #tpu.memory_space<vmem>>, vector<1x8x128xf32>
    %165 = vector.shape_cast %164 : vector<1x8x128xf32> to vector<8x128xf32>
    %cst_36 = arith.constant dense<0.000000e+00> : vector<8x128xf32>
    %166 = tpu.matmul %162, %0, %cst_36 {dimension_numbers = #tpu.dot_dimension_numbers<[1], [0], [0], [1], [0, 0, 1, 1], [], []>} : vector<8x32xf32>, vector<32x128xf32>, vector<8x128xf32> -> vector<8x128xf32>
    %167 = arith.addf %165, %166 : vector<8x128xf32>
    %168 = arith.negf %167 : vector<8x128xf32>
    %169 = math.exp %168 : vector<8x128xf32>
    %cst_37 = arith.constant 1.000000e+00 : f32
    %170 = vector.broadcast %cst_37 : f32 to vector<8x128xf32>
    %171 = arith.addf %170, %169 : vector<8x128xf32>
    %172 = arith.divf %170, %171 : vector<8x128xf32>
    %173 = math.tanh %167 : vector<8x128xf32>
    %174 = vector.extract_strided_slice %172 {offsets = [0, 0], sizes = [8, 32], strides = [1, 1]} : vector<8x128xf32> to vector<8x32xf32>
    %175 = vector.extract_strided_slice %172 {offsets = [0, 32], sizes = [8, 32], strides = [1, 1]} : vector<8x128xf32> to vector<8x32xf32>
    %176 = vector.extract_strided_slice %173 {offsets = [0, 64], sizes = [8, 32], strides = [1, 1]} : vector<8x128xf32> to vector<8x32xf32>
    %177 = vector.extract_strided_slice %172 {offsets = [0, 96], sizes = [8, 32], strides = [1, 1]} : vector<8x128xf32> to vector<8x32xf32>
    %178 = arith.mulf %175, %160 : vector<8x32xf32>
    %179 = arith.mulf %174, %176 : vector<8x32xf32>
    %180 = arith.addf %178, %179 : vector<8x32xf32>
    %181 = math.tanh %180 : vector<8x32xf32>
    %182 = arith.mulf %177, %181 : vector<8x32xf32>
    %c9_i32 = arith.constant 9 : i32
    %183 = arith.index_cast %c9_i32 : i32 to index
    %c0_38 = arith.constant 0 : index
    %c0_39 = arith.constant 0 : index
    %184 = vector.load %arg0[%183, %c0_38, %c0_39] : memref<16x8x128xf32, #tpu.memory_space<vmem>>, vector<1x8x128xf32>
    %185 = vector.shape_cast %184 : vector<1x8x128xf32> to vector<8x128xf32>
    %cst_40 = arith.constant dense<0.000000e+00> : vector<8x128xf32>
    %186 = tpu.matmul %182, %0, %cst_40 {dimension_numbers = #tpu.dot_dimension_numbers<[1], [0], [0], [1], [0, 0, 1, 1], [], []>} : vector<8x32xf32>, vector<32x128xf32>, vector<8x128xf32> -> vector<8x128xf32>
    %187 = arith.addf %185, %186 : vector<8x128xf32>
    %188 = arith.negf %187 : vector<8x128xf32>
    %189 = math.exp %188 : vector<8x128xf32>
    %cst_41 = arith.constant 1.000000e+00 : f32
    %190 = vector.broadcast %cst_41 : f32 to vector<8x128xf32>
    %191 = arith.addf %190, %189 : vector<8x128xf32>
    %192 = arith.divf %190, %191 : vector<8x128xf32>
    %193 = math.tanh %187 : vector<8x128xf32>
    %194 = vector.extract_strided_slice %192 {offsets = [0, 0], sizes = [8, 32], strides = [1, 1]} : vector<8x128xf32> to vector<8x32xf32>
    %195 = vector.extract_strided_slice %192 {offsets = [0, 32], sizes = [8, 32], strides = [1, 1]} : vector<8x128xf32> to vector<8x32xf32>
    %196 = vector.extract_strided_slice %193 {offsets = [0, 64], sizes = [8, 32], strides = [1, 1]} : vector<8x128xf32> to vector<8x32xf32>
    %197 = vector.extract_strided_slice %192 {offsets = [0, 96], sizes = [8, 32], strides = [1, 1]} : vector<8x128xf32> to vector<8x32xf32>
    %198 = arith.mulf %195, %180 : vector<8x32xf32>
    %199 = arith.mulf %194, %196 : vector<8x32xf32>
    %200 = arith.addf %198, %199 : vector<8x32xf32>
    %201 = math.tanh %200 : vector<8x32xf32>
    %202 = arith.mulf %197, %201 : vector<8x32xf32>
    %c10_i32 = arith.constant 10 : i32
    %203 = arith.index_cast %c10_i32 : i32 to index
    %c0_42 = arith.constant 0 : index
    %c0_43 = arith.constant 0 : index
    %204 = vector.load %arg0[%203, %c0_42, %c0_43] : memref<16x8x128xf32, #tpu.memory_space<vmem>>, vector<1x8x128xf32>
    %205 = vector.shape_cast %204 : vector<1x8x128xf32> to vector<8x128xf32>
    %cst_44 = arith.constant dense<0.000000e+00> : vector<8x128xf32>
    %206 = tpu.matmul %202, %0, %cst_44 {dimension_numbers = #tpu.dot_dimension_numbers<[1], [0], [0], [1], [0, 0, 1, 1], [], []>} : vector<8x32xf32>, vector<32x128xf32>, vector<8x128xf32> -> vector<8x128xf32>
    %207 = arith.addf %205, %206 : vector<8x128xf32>
    %208 = arith.negf %207 : vector<8x128xf32>
    %209 = math.exp %208 : vector<8x128xf32>
    %cst_45 = arith.constant 1.000000e+00 : f32
    %210 = vector.broadcast %cst_45 : f32 to vector<8x128xf32>
    %211 = arith.addf %210, %209 : vector<8x128xf32>
    %212 = arith.divf %210, %211 : vector<8x128xf32>
    %213 = math.tanh %207 : vector<8x128xf32>
    %214 = vector.extract_strided_slice %212 {offsets = [0, 0], sizes = [8, 32], strides = [1, 1]} : vector<8x128xf32> to vector<8x32xf32>
    %215 = vector.extract_strided_slice %212 {offsets = [0, 32], sizes = [8, 32], strides = [1, 1]} : vector<8x128xf32> to vector<8x32xf32>
    %216 = vector.extract_strided_slice %213 {offsets = [0, 64], sizes = [8, 32], strides = [1, 1]} : vector<8x128xf32> to vector<8x32xf32>
    %217 = vector.extract_strided_slice %212 {offsets = [0, 96], sizes = [8, 32], strides = [1, 1]} : vector<8x128xf32> to vector<8x32xf32>
    %218 = arith.mulf %215, %200 : vector<8x32xf32>
    %219 = arith.mulf %214, %216 : vector<8x32xf32>
    %220 = arith.addf %218, %219 : vector<8x32xf32>
    %221 = math.tanh %220 : vector<8x32xf32>
    %222 = arith.mulf %217, %221 : vector<8x32xf32>
    %c11_i32 = arith.constant 11 : i32
    %223 = arith.index_cast %c11_i32 : i32 to index
    %c0_46 = arith.constant 0 : index
    %c0_47 = arith.constant 0 : index
    %224 = vector.load %arg0[%223, %c0_46, %c0_47] : memref<16x8x128xf32, #tpu.memory_space<vmem>>, vector<1x8x128xf32>
    %225 = vector.shape_cast %224 : vector<1x8x128xf32> to vector<8x128xf32>
    %cst_48 = arith.constant dense<0.000000e+00> : vector<8x128xf32>
    %226 = tpu.matmul %222, %0, %cst_48 {dimension_numbers = #tpu.dot_dimension_numbers<[1], [0], [0], [1], [0, 0, 1, 1], [], []>} : vector<8x32xf32>, vector<32x128xf32>, vector<8x128xf32> -> vector<8x128xf32>
    %227 = arith.addf %225, %226 : vector<8x128xf32>
    %228 = arith.negf %227 : vector<8x128xf32>
    %229 = math.exp %228 : vector<8x128xf32>
    %cst_49 = arith.constant 1.000000e+00 : f32
    %230 = vector.broadcast %cst_49 : f32 to vector<8x128xf32>
    %231 = arith.addf %230, %229 : vector<8x128xf32>
    %232 = arith.divf %230, %231 : vector<8x128xf32>
    %233 = math.tanh %227 : vector<8x128xf32>
    %234 = vector.extract_strided_slice %232 {offsets = [0, 0], sizes = [8, 32], strides = [1, 1]} : vector<8x128xf32> to vector<8x32xf32>
    %235 = vector.extract_strided_slice %232 {offsets = [0, 32], sizes = [8, 32], strides = [1, 1]} : vector<8x128xf32> to vector<8x32xf32>
    %236 = vector.extract_strided_slice %233 {offsets = [0, 64], sizes = [8, 32], strides = [1, 1]} : vector<8x128xf32> to vector<8x32xf32>
    %237 = vector.extract_strided_slice %232 {offsets = [0, 96], sizes = [8, 32], strides = [1, 1]} : vector<8x128xf32> to vector<8x32xf32>
    %238 = arith.mulf %235, %220 : vector<8x32xf32>
    %239 = arith.mulf %234, %236 : vector<8x32xf32>
    %240 = arith.addf %238, %239 : vector<8x32xf32>
    %241 = math.tanh %240 : vector<8x32xf32>
    %242 = arith.mulf %237, %241 : vector<8x32xf32>
    %c12_i32 = arith.constant 12 : i32
    %243 = arith.index_cast %c12_i32 : i32 to index
    %c0_50 = arith.constant 0 : index
    %c0_51 = arith.constant 0 : index
    %244 = vector.load %arg0[%243, %c0_50, %c0_51] : memref<16x8x128xf32, #tpu.memory_space<vmem>>, vector<1x8x128xf32>
    %245 = vector.shape_cast %244 : vector<1x8x128xf32> to vector<8x128xf32>
    %cst_52 = arith.constant dense<0.000000e+00> : vector<8x128xf32>
    %246 = tpu.matmul %242, %0, %cst_52 {dimension_numbers = #tpu.dot_dimension_numbers<[1], [0], [0], [1], [0, 0, 1, 1], [], []>} : vector<8x32xf32>, vector<32x128xf32>, vector<8x128xf32> -> vector<8x128xf32>
    %247 = arith.addf %245, %246 : vector<8x128xf32>
    %248 = arith.negf %247 : vector<8x128xf32>
    %249 = math.exp %248 : vector<8x128xf32>
    %cst_53 = arith.constant 1.000000e+00 : f32
    %250 = vector.broadcast %cst_53 : f32 to vector<8x128xf32>
    %251 = arith.addf %250, %249 : vector<8x128xf32>
    %252 = arith.divf %250, %251 : vector<8x128xf32>
    %253 = math.tanh %247 : vector<8x128xf32>
    %254 = vector.extract_strided_slice %252 {offsets = [0, 0], sizes = [8, 32], strides = [1, 1]} : vector<8x128xf32> to vector<8x32xf32>
    %255 = vector.extract_strided_slice %252 {offsets = [0, 32], sizes = [8, 32], strides = [1, 1]} : vector<8x128xf32> to vector<8x32xf32>
    %256 = vector.extract_strided_slice %253 {offsets = [0, 64], sizes = [8, 32], strides = [1, 1]} : vector<8x128xf32> to vector<8x32xf32>
    %257 = vector.extract_strided_slice %252 {offsets = [0, 96], sizes = [8, 32], strides = [1, 1]} : vector<8x128xf32> to vector<8x32xf32>
    %258 = arith.mulf %255, %240 : vector<8x32xf32>
    %259 = arith.mulf %254, %256 : vector<8x32xf32>
    %260 = arith.addf %258, %259 : vector<8x32xf32>
    %261 = math.tanh %260 : vector<8x32xf32>
    %262 = arith.mulf %257, %261 : vector<8x32xf32>
    %c13_i32 = arith.constant 13 : i32
    %263 = arith.index_cast %c13_i32 : i32 to index
    %c0_54 = arith.constant 0 : index
    %c0_55 = arith.constant 0 : index
    %264 = vector.load %arg0[%263, %c0_54, %c0_55] : memref<16x8x128xf32, #tpu.memory_space<vmem>>, vector<1x8x128xf32>
    %265 = vector.shape_cast %264 : vector<1x8x128xf32> to vector<8x128xf32>
    %cst_56 = arith.constant dense<0.000000e+00> : vector<8x128xf32>
    %266 = tpu.matmul %262, %0, %cst_56 {dimension_numbers = #tpu.dot_dimension_numbers<[1], [0], [0], [1], [0, 0, 1, 1], [], []>} : vector<8x32xf32>, vector<32x128xf32>, vector<8x128xf32> -> vector<8x128xf32>
    %267 = arith.addf %265, %266 : vector<8x128xf32>
    %268 = arith.negf %267 : vector<8x128xf32>
    %269 = math.exp %268 : vector<8x128xf32>
    %cst_57 = arith.constant 1.000000e+00 : f32
    %270 = vector.broadcast %cst_57 : f32 to vector<8x128xf32>
    %271 = arith.addf %270, %269 : vector<8x128xf32>
    %272 = arith.divf %270, %271 : vector<8x128xf32>
    %273 = math.tanh %267 : vector<8x128xf32>
    %274 = vector.extract_strided_slice %272 {offsets = [0, 0], sizes = [8, 32], strides = [1, 1]} : vector<8x128xf32> to vector<8x32xf32>
    %275 = vector.extract_strided_slice %272 {offsets = [0, 32], sizes = [8, 32], strides = [1, 1]} : vector<8x128xf32> to vector<8x32xf32>
    %276 = vector.extract_strided_slice %273 {offsets = [0, 64], sizes = [8, 32], strides = [1, 1]} : vector<8x128xf32> to vector<8x32xf32>
    %277 = vector.extract_strided_slice %272 {offsets = [0, 96], sizes = [8, 32], strides = [1, 1]} : vector<8x128xf32> to vector<8x32xf32>
    %278 = arith.mulf %275, %260 : vector<8x32xf32>
    %279 = arith.mulf %274, %276 : vector<8x32xf32>
    %280 = arith.addf %278, %279 : vector<8x32xf32>
    %281 = math.tanh %280 : vector<8x32xf32>
    %282 = arith.mulf %277, %281 : vector<8x32xf32>
    %c14_i32 = arith.constant 14 : i32
    %283 = arith.index_cast %c14_i32 : i32 to index
    %c0_58 = arith.constant 0 : index
    %c0_59 = arith.constant 0 : index
    %284 = vector.load %arg0[%283, %c0_58, %c0_59] : memref<16x8x128xf32, #tpu.memory_space<vmem>>, vector<1x8x128xf32>
    %285 = vector.shape_cast %284 : vector<1x8x128xf32> to vector<8x128xf32>
    %cst_60 = arith.constant dense<0.000000e+00> : vector<8x128xf32>
    %286 = tpu.matmul %282, %0, %cst_60 {dimension_numbers = #tpu.dot_dimension_numbers<[1], [0], [0], [1], [0, 0, 1, 1], [], []>} : vector<8x32xf32>, vector<32x128xf32>, vector<8x128xf32> -> vector<8x128xf32>
    %287 = arith.addf %285, %286 : vector<8x128xf32>
    %288 = arith.negf %287 : vector<8x128xf32>
    %289 = math.exp %288 : vector<8x128xf32>
    %cst_61 = arith.constant 1.000000e+00 : f32
    %290 = vector.broadcast %cst_61 : f32 to vector<8x128xf32>
    %291 = arith.addf %290, %289 : vector<8x128xf32>
    %292 = arith.divf %290, %291 : vector<8x128xf32>
    %293 = math.tanh %287 : vector<8x128xf32>
    %294 = vector.extract_strided_slice %292 {offsets = [0, 0], sizes = [8, 32], strides = [1, 1]} : vector<8x128xf32> to vector<8x32xf32>
    %295 = vector.extract_strided_slice %292 {offsets = [0, 32], sizes = [8, 32], strides = [1, 1]} : vector<8x128xf32> to vector<8x32xf32>
    %296 = vector.extract_strided_slice %293 {offsets = [0, 64], sizes = [8, 32], strides = [1, 1]} : vector<8x128xf32> to vector<8x32xf32>
    %297 = vector.extract_strided_slice %292 {offsets = [0, 96], sizes = [8, 32], strides = [1, 1]} : vector<8x128xf32> to vector<8x32xf32>
    %298 = arith.mulf %295, %280 : vector<8x32xf32>
    %299 = arith.mulf %294, %296 : vector<8x32xf32>
    %300 = arith.addf %298, %299 : vector<8x32xf32>
    %301 = math.tanh %300 : vector<8x32xf32>
    %302 = arith.mulf %297, %301 : vector<8x32xf32>
    %c15_i32 = arith.constant 15 : i32
    %303 = arith.index_cast %c15_i32 : i32 to index
    %c0_62 = arith.constant 0 : index
    %c0_63 = arith.constant 0 : index
    %304 = vector.load %arg0[%303, %c0_62, %c0_63] : memref<16x8x128xf32, #tpu.memory_space<vmem>>, vector<1x8x128xf32>
    %305 = vector.shape_cast %304 : vector<1x8x128xf32> to vector<8x128xf32>
    %cst_64 = arith.constant dense<0.000000e+00> : vector<8x128xf32>
    %306 = tpu.matmul %302, %0, %cst_64 {dimension_numbers = #tpu.dot_dimension_numbers<[1], [0], [0], [1], [0, 0, 1, 1], [], []>} : vector<8x32xf32>, vector<32x128xf32>, vector<8x128xf32> -> vector<8x128xf32>
    %307 = arith.addf %305, %306 : vector<8x128xf32>
    %308 = arith.negf %307 : vector<8x128xf32>
    %309 = math.exp %308 : vector<8x128xf32>
    %cst_65 = arith.constant 1.000000e+00 : f32
    %310 = vector.broadcast %cst_65 : f32 to vector<8x128xf32>
    %311 = arith.addf %310, %309 : vector<8x128xf32>
    %312 = arith.divf %310, %311 : vector<8x128xf32>
    %313 = math.tanh %307 : vector<8x128xf32>
    %314 = vector.extract_strided_slice %312 {offsets = [0, 0], sizes = [8, 32], strides = [1, 1]} : vector<8x128xf32> to vector<8x32xf32>
    %315 = vector.extract_strided_slice %312 {offsets = [0, 32], sizes = [8, 32], strides = [1, 1]} : vector<8x128xf32> to vector<8x32xf32>
    %316 = vector.extract_strided_slice %313 {offsets = [0, 64], sizes = [8, 32], strides = [1, 1]} : vector<8x128xf32> to vector<8x32xf32>
    %317 = vector.extract_strided_slice %312 {offsets = [0, 96], sizes = [8, 32], strides = [1, 1]} : vector<8x128xf32> to vector<8x32xf32>
    %318 = arith.mulf %315, %300 : vector<8x32xf32>
    %319 = arith.mulf %314, %316 : vector<8x32xf32>
    %320 = arith.addf %318, %319 : vector<8x32xf32>
    %321 = math.tanh %320 : vector<8x32xf32>
    %322 = arith.mulf %317, %321 : vector<8x32xf32>
    %c16_i32 = arith.constant 16 : i32
    %c0_66 = arith.constant 0 : index
    %c0_67 = arith.constant 0 : index
    %323 = vector.load %arg2[%c0_66, %c0_67] : memref<32x128xf32, #tpu.memory_space<vmem>>, vector<32x128xf32>
    %cst_68 = arith.constant dense<0.000000e+00> : vector<8x128xf32>
    %324 = tpu.matmul %322, %323, %cst_68 {dimension_numbers = #tpu.dot_dimension_numbers<[1], [0], [0], [1], [0, 0, 1, 1], [], []>} : vector<8x32xf32>, vector<32x128xf32>, vector<8x128xf32> -> vector<8x128xf32>
    %c0_69 = arith.constant 0 : index
    %c0_70 = arith.constant 0 : index
    %325 = vector.load %arg3[%c0_69, %c0_70] : memref<1x128xf32, #tpu.memory_space<vmem>>, vector<1x128xf32>
    %326 = vector.broadcast %325 : vector<1x128xf32> to vector<8x128xf32>
    %327 = arith.addf %324, %326 : vector<8x128xf32>
    %c0_71 = arith.constant 0 : index
    %c0_72 = arith.constant 0 : index
    %328 = vector.load %arg4[%c0_71, %c0_72] : memref<8x128xf32, #tpu.memory_space<vmem>>, vector<8x128xf32>
    tpu.vector_store %arg4[%c0_71, %c0_72], %327 {strides = array<i32>} : memref<8x128xf32, #tpu.memory_space<vmem>>, vector<8x128xf32>,
    return
  }
}

</mosaic_0001>

<llo_original>
// kernel: tpu_custom_call.1
$region0: #{tpu_custom_call.1}
  #allocation0 [shape = 'u32[]', space=smem, size = 0x4, offset = 0x4, fixed_abs, tag = 'smem constant byte address 0x4 - core index']
  #allocation1 [shape = 'u32[144,128]{1,0:T(1,128)}', space=vmem, size = 0x12000, scoped, tag = 'internal scratch']
  %s0 = inlined_call_operand.hbm [shape: f32[16,8,128], index: 0, kind: input, shape index: {}]
  %s1 = inlined_call_operand.hbm [shape: f32[32,128], index: 1, kind: input, shape index: {}]
  %s2 = inlined_call_operand.hbm [shape: f32[32,128], index: 2, kind: input, shape index: {}]
  %s3 = inlined_call_operand.vmem [shape: f32[1,128], index: 3, kind: input, shape index: {}]
  %s4 = inlined_call_operand.hbm [shape: f32[8,128], index: 4, kind: output, shape index: {}]
  %s5 = sld [smem:[#allocation0]]
  $region38: #{tpu_custom_call.1} parent=0
    _
  %s7 = ssub.s32 1, %s5
  %s8 = scalar_select 0, %s7, %s5
  $region1: #{tpu_custom_call.1} parent=0
    #allocation2 [shape = 'u8[65536]{0}', space=vmem, size = 0x10000, scoped, tag = 'input window, operand 0, single buffered']
    #allocation3 [shape = 's32[1]{0}', space=sflag, size = 0x4, scoped, tag = 'scoped memory for tpu_custom_call.1']
    #allocation4 [shape = 's32[1]{0}', space=sflag, size = 0x4, scoped, tag = 'scoped memory for tpu_custom_call.1']
    #allocation5 [shape = 'u8[16384]{0}', space=vmem, size = 0x4000, scoped, tag = 'input window, operand 1, single buffered']
    #allocation6 [shape = 's32[1]{0}', space=sflag, size = 0x4, scoped, tag = 'scoped memory for tpu_custom_call.1']
    #allocation7 [shape = 'u8[16384]{0}', space=vmem, size = 0x4000, scoped, tag = 'input window, operand 2, single buffered']
    #allocation8 [shape = 'u8[4096]{0}', space=vmem, size = 0x1000, scoped, tag = 'output window, operand 0, single buffered']
    %9 = vsyncpa [#allocation3], 0
    %10 = vsyncpa [#allocation6], 0
    %11 = vsyncpa [#allocation4], 0
    // Predicated region
    $region2: #{tpu_custom_call.1} parent=1 // pred_check
      _
    $region3: #{tpu_custom_call.1} parent=1 // pred_check_branch
      %13 = sbr.rel (0) target = $region5
    $region4: #{tpu_custom_call.1} parent=1 // pred_region
      %s15 = ssub.s32 2048, 2048
      %16 = vsyncadd [#allocation3], %s15
      %s17 = sshll.u32 [#allocation2], 4
      %s18 = int_to_ptr.vmem [resolvable:$true] %s17
      %23 = dma.hbm_to_vmem [thread:$0]  %s0, 2048, %s18, [#allocation3], 128, 128, 8
    $region5: #{tpu_custom_call.1} parent=1 // pred_fallthru
      _
    // Predicated region
    $region6: #{tpu_custom_call.1} parent=1 // pred_check
      _
    $region7: #{tpu_custom_call.1} parent=1 // pred_check_branch
      %25 = sbr.rel (0) target = $region9
    $region8: #{tpu_custom_call.1} parent=1 // pred_region
      %s27 = ssub.s32 512, 512
      %28 = vsyncadd [#allocation6], %s27
      %s29 = sshll.u32 [#allocation5], 4
      %s30 = int_to_ptr.vmem [resolvable:$true] %s29
      %35 = dma.hbm_to_vmem [thread:$0]  %s1, 512, %s30, [#allocation6], 128, 128, 8
    $region9: #{tpu_custom_call.1} parent=1 // pred_fallthru
      _
    // Predicated region
    $region10: #{tpu_custom_call.1} parent=1 // pred_check
      _
    $region11: #{tpu_custom_call.1} parent=1 // pred_check_branch
      %37 = sbr.rel (0) target = $region13
    $region12: #{tpu_custom_call.1} parent=1 // pred_region
      %s39 = ssub.s32 512, 512
      %40 = vsyncadd [#allocation6], %s39
      %s41 = sshll.u32 [#allocation7], 4
      %s42 = int_to_ptr.vmem [resolvable:$true] %s41
      %47 = dma.hbm_to_vmem [thread:$0]  %s2, 512, %s42, [#allocation6], 128, 128, 8
    $region13: #{tpu_custom_call.1} parent=1 // pred_fallthru
      _
    // Predicated region
    $region14: #{tpu_custom_call.1} parent=1 // pred_check
      _
    $region15: #{tpu_custom_call.1} parent=1 // pred_check_branch
      %49 = sbr.rel (0) target = $region17
    $region16: #{tpu_custom_call.1} parent=1 // pred_region
      _
    $region17: #{tpu_custom_call.1} parent=1 // pred_fallthru
      _
    // Predicated region
    $region18: #{tpu_custom_call.1} parent=1 // pred_check
      _
    $region19: #{tpu_custom_call.1} parent=1 // pred_check_branch
      %51 = sbr.rel (0) target = $region21
    $region20: #{tpu_custom_call.1} parent=1 // pred_region
      %52 = dma.done [#allocation3], 2048
    $region21: #{tpu_custom_call.1} parent=1 // pred_fallthru
      _
    // Predicated region
    $region22: #{tpu_custom_call.1} parent=1 // pred_check
      _
    $region23: #{tpu_custom_call.1} parent=1 // pred_check_branch
      %54 = sbr.rel (0) target = $region25
    $region24: #{tpu_custom_call.1} parent=1 // pred_region
      %55 = dma.done [#allocation6], 512
    $region25: #{tpu_custom_call.1} parent=1 // pred_fallthru
      _
    // Predicated region
    $region26: #{tpu_custom_call.1} parent=1 // pred_check
      _
    $region27: #{tpu_custom_call.1} parent=1 // pred_check_branch
      %57 = sbr.rel (0) target = $region29
    $region28: #{tpu_custom_call.1} parent=1 // pred_region
      %58 = dma.done [#allocation6], 512
    $region29: #{tpu_custom_call.1} parent=1 // pred_fallthru
      _
    %v59 = vld [vmem:[#allocation5] sm:$0xff]
    %v60 = vld [vmem:[#allocation5 + $0x8] sm:$0xff]
    %v61 = vld [vmem:[#allocation5 + $0x10] sm:$0xff]
    %v62 = vld [vmem:[#allocation5 + $0x18] sm:$0xff]
    %v63 = vld [vmem:[#allocation2] sm:$0xff]
    %vm64 = vcmask 261120
    %v66 = vsel %vm64, 0.0, 0
    %68 = vmatprep.subr.mxu0 0.0
    %69 = vmatpush1.msra.mxu0 0.0
    %70 = vmatprep.subr.mxu0 0.0
    %71 = vmatpush1.msra.mxu0 0.0
    %72 = vmatprep.subr.mxu0 0.0
    %73 = vmatpush1.msra.mxu0 0.0
    %74 = vmatprep.subr.mxu0 0.0
    %75 = vmatpush1.msra.mxu0 0.0
    %76 = vmatprep.subr.mxu0 0.0
    %77 = vmatpush1.msra.mxu0 0.0
    %78 = vmatprep.subr.mxu0 0.0
    %79 = vmatpush1.msra.mxu0 0.0
    %80 = vmatprep.subr.mxu0 0.0
    %81 = vmatpush1.msra.mxu0 0.0
    %82 = vmatprep.subr.mxu0 0.0
    %83 = vmatpush1.msra.mxu0 0.0
    %84 = vmatprep.subr.mxu0 0.0
    %85 = vmatpush1.msra.mxu0 0.0
    %86 = vmatprep.subr.mxu0 0.0
    %87 = vmatpush1.msra.mxu0 0.0
    %88 = vmatprep.subr.mxu0 0.0
    %89 = vmatpush1.msra.mxu0 0.0
    %90 = vmatprep.subr.mxu0 0.0
    %91 = vmatpush1.msra.mxu0 0.0
    %92 = vmatprep.subr.mxu0 0.0
    %93 = vmatpush1.msra.mxu0 %v62
    %94 = vmatprep.subr.mxu0 0.0
    %95 = vmatpush1.msra.mxu0 %v61
    %96 = vmatprep.subr.mxu0 0.0
    %97 = vmatpush1.msra.mxu0 %v60
    %98 = vmatprep.subr.mxu0 0.0
    %99 = vmatpush1.msra.mxu0 %v59
    %100 = vmatprep.subr.mxu0 0.0
    %101 = vmatpush2.msra.mxu0 0.0
    %102 = vmatprep.subr.mxu0 0.0
    %103 = vmatpush2.msra.mxu0 0.0
    %104 = vmatprep.subr.mxu0 0.0
    %105 = vmatpush2.msra.mxu0 0.0
    %106 = vmatprep.subr.mxu0 0.0
    %107 = vmatpush2.msra.mxu0 0.0
    %108 = vmatprep.subr.mxu0 0.0
    %109 = vmatpush2.msra.mxu0 0.0
    %110 = vmatprep.subr.mxu0 0.0
    %111 = vmatpush2.msra.mxu0 0.0
    %112 = vmatprep.subr.mxu0 0.0
    %113 = vmatpush2.msra.mxu0 0.0
    %114 = vmatprep.subr.mxu0 0.0
    %115 = vmatpush2.msra.mxu0 0.0
    %116 = vmatprep.subr.mxu0 0.0
    %117 = vmatpush2.msra.mxu0 0.0
    %118 = vmatprep.subr.mxu0 0.0
    %119 = vmatpush2.msra.mxu0 0.0
    %120 = vmatprep.subr.mxu0 0.0
    %121 = vmatpush2.msra.mxu0 0.0
    %122 = vmatprep.subr.mxu0 0.0
    %123 = vmatpush2.msra.mxu0 0.0
    %124 = vmatprep.subr.mxu0 0.0
    %125 = vmatpush2.msra.mxu0 0.0
    %126 = vmatprep.subr.mxu0 0.0
    %127 = vmatpush2.msra.mxu0 0.0
    %128 = vmatprep.subr.mxu0 0.0
    %129 = vmatpush2.msra.mxu0 0.0
    %130 = vmatprep.subr.mxu0 0.0
    %131 = vmatpush2.msra.mxu0 0.0
    %132 = vmatprep.mubr.f32.mxu0 0.0
    %133 = vmatmul.mubr.f32.gmra.mxu0 %v66
    %v134 = vpop.f32.mrf.mxu0
    %v135 = vadd.f32 0.0, %v134
    %v136 = vpop.f32.mrf.mxu0
    %137 = vdwg.mxu0
    %v138 = vadd.f32 %v63, %v135
    %v139 = vxor.u32 %v138, 2147483648
    %v140 = vmul.f32 %v139, 1.442695
    %v141 = vpow.pop %v140
    %v142 = vadd.f32 %v141, 1.0
    %v143 = vrcp.pop %v142
    %v144 = vmul.f32 1.0, %v143
    %v145 = vtanh.pop %v138
    %v146 = vmul.f32 %v144, 0.0
    %148 = vrot.lane.b32.xlu0 %v145, 64
    %v149 = vpop.permute.xlu0 %148
    %v151 = vmul.f32 %v144, %v149
    %153 = vrot.lane.b32.xlu0 %v151, 32
    %v154 = vpop.permute.xlu0 %153
    %v156 = vadd.f32 %v146, %v154
    %v157 = vtanh.pop %v156
    %159 = vrot.lane.b32.xlu0 %v157, 64
    %v160 = vpop.permute.xlu0 %159
    %v162 = vmul.f32 %v144, %v160
    %s163 = scalar_lea.vmem [#allocation2], 8
    %v164 = vld [vmem:[%s163] sm:$0xff]
    %166 = vrot.lane.b32.xlu0 %v162, 32
    %v167 = vpop.permute.xlu0 %166
    %v168 = vsel %vm64, %v167, 0
    %170 = vmatprep.subr.mxu0 0.0
    %171 = vmatpush1.msra.mxu0 0.0
    %172 = vmatprep.subr.mxu0 0.0
    %173 = vmatpush1.msra.mxu0 0.0
    %174 = vmatprep.subr.mxu0 0.0
    %175 = vmatpush1.msra.mxu0 0.0
    %176 = vmatprep.subr.mxu0 0.0
    %177 = vmatpush1.msra.mxu0 0.0
    %178 = vmatprep.subr.mxu0 0.0
    %179 = vmatpush1.msra.mxu0 0.0
    %180 = vmatprep.subr.mxu0 0.0
    %181 = vmatpush1.msra.mxu0 0.0
    %182 = vmatprep.subr.mxu0 0.0
    %183 = vmatpush1.msra.mxu0 0.0
    %184 = vmatprep.subr.mxu0 0.0
    %185 = vmatpush1.msra.mxu0 0.0
    %186 = vmatprep.subr.mxu0 0.0
    %187 = vmatpush1.msra.mxu0 0.0
    %188 = vmatprep.subr.mxu0 0.0
    %189 = vmatpush1.msra.mxu0 0.0
    %190 = vmatprep.subr.mxu0 0.0
    %191 = vmatpush1.msra.mxu0 0.0
    %192 = vmatprep.subr.mxu0 0.0
    %193 = vmatpush1.msra.mxu0 0.0
    %194 = vmatprep.subr.mxu0 0.0
    %195 = vmatpush1.msra.mxu0 %v62
    %196 = vmatprep.subr.mxu0 0.0
    %197 = vmatpush1.msra.mxu0 %v61
    %198 = vmatprep.subr.mxu0 0.0
    %199 = vmatpush1.msra.mxu0 %v60
    %200 = vmatprep.subr.mxu0 0.0
    %201 = vmatpush1.msra.mxu0 %v59
    %202 = vmatprep.subr.mxu0 0.0
    %203 = vmatpush2.msra.mxu0 0.0
    %204 = vmatprep.subr.mxu0 0.0
    %205 = vmatpush2.msra.mxu0 0.0
    %206 = vmatprep.subr.mxu0 0.0
    %207 = vmatpush2.msra.mxu0 0.0
    %208 = vmatprep.subr.mxu0 0.0
    %209 = vmatpush2.msra.mxu0 0.0
    %210 = vmatprep.subr.mxu0 0.0
    %211 = vmatpush2.msra.mxu0 0.0
    %212 = vmatprep.subr.mxu0 0.0
    %213 = vmatpush2.msra.mxu0 0.0
    %214 = vmatprep.subr.mxu0 0.0
    %215 = vmatpush2.msra.mxu0 0.0
    %216 = vmatprep.subr.mxu0 0.0
    %217 = vmatpush2.msra.mxu0 0.0
    %218 = vmatprep.subr.mxu0 0.0
    %219 = vmatpush2.msra.mxu0 0.0
    %220 = vmatprep.subr.mxu0 0.0
    %221 = vmatpush2.msra.mxu0 0.0
    %222 = vmatprep.subr.mxu0 0.0
    %223 = vmatpush2.msra.mxu0 0.0
    %224 = vmatprep.subr.mxu0 0.0
    %225 = vmatpush2.msra.mxu0 0.0
    %226 = vmatprep.subr.mxu0 0.0
    %227 = vmatpush2.msra.mxu0 0.0
    %228 = vmatprep.subr.mxu0 0.0
    %229 = vmatpush2.msra.mxu0 0.0
    %230 = vmatprep.subr.mxu0 0.0
    %231 = vmatpush2.msra.mxu0 0.0
    %232 = vmatprep.subr.mxu0 0.0
    %233 = vmatpush2.msra.mxu0 0.0
    %234 = vmatprep.mubr.f32.mxu0 0.0
    %235 = vmatmul.mubr.f32.gmra.mxu0 %v168
    %v236 = vpop.f32.mrf.mxu0
    %v237 = vadd.f32 0.0, %v236
    %v238 = vpop.f32.mrf.mxu0
    %239 = vdwg.mxu0
    %v240 = vadd.f32 %v164, %v237
    %v241 = vxor.u32 %v240, 2147483648
    %v242 = vmul.f32 %v241, 1.442695
    %v243 = vpow.pop %v242
    %v244 = vadd.f32 %v243, 1.0
    %v245 = vrcp.pop %v244
    %v246 = vmul.f32 1.0, %v245
    %v247 = vtanh.pop %v240
    %v248 = vmul.f32 %v246, %v156
    %250 = vrot.lane.b32.xlu0 %v247, 64
    %v251 = vpop.permute.xlu0 %250
    %v253 = vmul.f32 %v246, %v251
    %255 = vrot.lane.b32.xlu0 %v253, 32
    %v256 = vpop.permute.xlu0 %255
    %v258 = vadd.f32 %v248, %v256
    %v259 = vtanh.pop %v258
    %261 = vrot.lane.b32.xlu0 %v259, 64
    %v262 = vpop.permute.xlu0 %261
    %v264 = vmul.f32 %v246, %v262
    %s265 = scalar_lea.vmem [#allocation2], 16
    %v266 = vld [vmem:[%s265] sm:$0xff]
    %268 = vrot.lane.b32.xlu0 %v264, 32
    %v269 = vpop.permute.xlu0 %268
    %v270 = vsel %vm64, %v269, 0
    %272 = vmatprep.subr.mxu0 0.0
    %273 = vmatpush1.msra.mxu0 0.0
    %274 = vmatprep.subr.mxu0 0.0
    %275 = vmatpush1.msra.mxu0 0.0
    %276 = vmatprep.subr.mxu0 0.0
    %277 = vmatpush1.msra.mxu0 0.0
    %278 = vmatprep.subr.mxu0 0.0
    %279 = vmatpush1.msra.mxu0 0.0
    %280 = vmatprep.subr.mxu0 0.0
    %281 = vmatpush1.msra.mxu0 0.0
    %282 = vmatprep.subr.mxu0 0.0
    %283 = vmatpush1.msra.mxu0 0.0
    %284 = vmatprep.subr.mxu0 0.0
    %285 = vmatpush1.msra.mxu0 0.0
    %286 = vmatprep.subr.mxu0 0.0
    %287 = vmatpush1.msra.mxu0 0.0
    %288 = vmatprep.subr.mxu0 0.0
    %289 = vmatpush1.msra.mxu0 0.0
    %290 = vmatprep.subr.mxu0 0.0
    %291 = vmatpush1.msra.mxu0 0.0
    %292 = vmatprep.subr.mxu0 0.0
    %293 = vmatpush1.msra.mxu0 0.0
    %294 = vmatprep.subr.mxu0 0.0
    %295 = vmatpush1.msra.mxu0 0.0
    %296 = vmatprep.subr.mxu0 0.0
    %297 = vmatpush1.msra.mxu0 %v62
    %298 = vmatprep.subr.mxu0 0.0
    %299 = vmatpush1.msra.mxu0 %v61
    %300 = vmatprep.subr.mxu0 0.0
    %301 = vmatpush1.msra.mxu0 %v60
    %302 = vmatprep.subr.mxu0 0.0
    %303 = vmatpush1.msra.mxu0 %v59
    %304 = vmatprep.subr.mxu0 0.0
    %305 = vmatpush2.msra.mxu0 0.0
    %306 = vmatprep.subr.mxu0 0.0
    %307 = vmatpush2.msra.mxu0 0.0
    %308 = vmatprep.subr.mxu0 0.0
    %309 = vmatpush2.msra.mxu0 0.0
    %310 = vmatprep.subr.mxu0 0.0
    %311 = vmatpush2.msra.mxu0 0.0
    %312 = vmatprep.subr.mxu0 0.0
    %313 = vmatpush2.msra.mxu0 0.0
    %314 = vmatprep.subr.mxu0 0.0
    %315 = vmatpush2.msra.mxu0 0.0
    %316 = vmatprep.subr.mxu0 0.0
    %317 = vmatpush2.msra.mxu0 0.0
    %318 = vmatprep.subr.mxu0 0.0
    %319 = vmatpush2.msra.mxu0 0.0
    %320 = vmatprep.subr.mxu0 0.0
    %321 = vmatpush2.msra.mxu0 0.0
    %322 = vmatprep.subr.mxu0 0.0
    %323 = vmatpush2.msra.mxu0 0.0
    %324 = vmatprep.subr.mxu0 0.0
    %325 = vmatpush2.msra.mxu0 0.0
    %326 = vmatprep.subr.mxu0 0.0
    %327 = vmatpush2.msra.mxu0 0.0
    %328 = vmatprep.subr.mxu0 0.0
    %329 = vmatpush2.msra.mxu0 0.0
    %330 = vmatprep.subr.mxu0 0.0
    %331 = vmatpush2.msra.mxu0 0.0
    %332 = vmatprep.subr.mxu0 0.0
    %333 = vmatpush2.msra.mxu0 0.0
    %334 = vmatprep.subr.mxu0 0.0
    %335 = vmatpush2.msra.mxu0 0.0
    %336 = vmatprep.mubr.f32.mxu0 0.0
    %337 = vmatmul.mubr.f32.gmra.mxu0 %v270
    %v338 = vpop.f32.mrf.mxu0
    %v339 = vadd.f32 0.0, %v338
    %v340 = vpop.f32.mrf.mxu0
    %341 = vdwg.mxu0
    %v342 = vadd.f32 %v266, %v339
    %v343 = vxor.u32 %v342, 2147483648
    %v344 = vmul.f32 %v343, 1.442695
    %v345 = vpow.pop %v344
    %v346 = vadd.f32 %v345, 1.0
    %v347 = vrcp.pop %v346
    %v348 = vmul.f32 1.0, %v347
    %v349 = vtanh.pop %v342
    %v350 = vmul.f32 %v348, %v258
    %352 = vrot.lane.b32.xlu0 %v349, 64
    %v353 = vpop.permute.xlu0 %352
    %v355 = vmul.f32 %v348, %v353
    %357 = vrot.lane.b32.xlu0 %v355, 32
    %v358 = vpop.permute.xlu0 %357
    %v360 = vadd.f32 %v350, %v358
    %v361 = vtanh.pop %v360
    %363 = vrot.lane.b32.xlu0 %v361, 64
    %v364 = vpop.permute.xlu0 %363
    %v366 = vmul.f32 %v348, %v364
    %s367 = scalar_lea.vmem [#allocation2], 24
    %v368 = vld [vmem:[%s367] sm:$0xff]
    %370 = vrot.lane.b32.xlu0 %v366, 32
    %v371 = vpop.permute.xlu0 %370
    %v372 = vsel %vm64, %v371, 0
    %374 = vmatprep.subr.mxu0 0.0
    %375 = vmatpush1.msra.mxu0 0.0
    %376 = vmatprep.subr.mxu0 0.0
    %377 = vmatpush1.msra.mxu0 0.0
    %378 = vmatprep.subr.mxu0 0.0
    %379 = vmatpush1.msra.mxu0 0.0
    %380 = vmatprep.subr.mxu0 0.0
    %381 = vmatpush1.msra.mxu0 0.0
    %382 = vmatprep.subr.mxu0 0.0
    %383 = vmatpush1.msra.mxu0 0.0
    %384 = vmatprep.subr.mxu0 0.0
    %385 = vmatpush1.msra.mxu0 0.0
    %386 = vmatprep.subr.mxu0 0.0
    %387 = vmatpush1.msra.mxu0 0.0
    %388 = vmatprep.subr.mxu0 0.0
    %389 = vmatpush1.msra.mxu0 0.0
    %390 = vmatprep.subr.mxu0 0.0
    %391 = vmatpush1.msra.mxu0 0.0
    %392 = vmatprep.subr.mxu0 0.0
    %393 = vmatpush1.msra.mxu0 0.0
    %394 = vmatprep.subr.mxu0 0.0
    %395 = vmatpush1.msra.mxu0 0.0
    %396 = vmatprep.subr.mxu0 0.0
    %397 = vmatpush1.msra.mxu0 0.0
    %398 = vmatprep.subr.mxu0 0.0
    %399 = vmatpush1.msra.mxu0 %v62
    %400 = vmatprep.subr.mxu0 0.0
    %401 = vmatpush1.msra.mxu0 %v61
    %402 = vmatprep.subr.mxu0 0.0
    %403 = vmatpush1.msra.mxu0 %v60
    %404 = vmatprep.subr.mxu0 0.0
    %405 = vmatpush1.msra.mxu0 %v59
    %406 = vmatprep.subr.mxu0 0.0
    %407 = vmatpush2.msra.mxu0 0.0
    %408 = vmatprep.subr.mxu0 0.0
    %409 = vmatpush2.msra.mxu0 0.0
    %410 = vmatprep.subr.mxu0 0.0
    %411 = vmatpush2.msra.mxu0 0.0
    %412 = vmatprep.subr.mxu0 0.0
    %413 = vmatpush2.msra.mxu0 0.0
    %414 = vmatprep.subr.mxu0 0.0
    %415 = vmatpush2.msra.mxu0 0.0
    %416 = vmatprep.subr.mxu0 0.0
    %417 = vmatpush2.msra.mxu0 0.0
    %418 = vmatprep.subr.mxu0 0.0
    %419 = vmatpush2.msra.mxu0 0.0
    %420 = vmatprep.subr.mxu0 0.0
    %421 = vmatpush2.msra.mxu0 0.0
    %422 = vmatprep.subr.mxu0 0.0
    %423 = vmatpush2.msra.mxu0 0.0
    %424 = vmatprep.subr.mxu0 0.0
    %425 = vmatpush2.msra.mxu0 0.0
    %426 = vmatprep.subr.mxu0 0.0
    %427 = vmatpush2.msra.mxu0 0.0
    %428 = vmatprep.subr.mxu0 0.0
    %429 = vmatpush2.msra.mxu0 0.0
    %430 = vmatprep.subr.mxu0 0.0
    %431 = vmatpush2.msra.mxu0 0.0
    %432 = vmatprep.subr.mxu0 0.0
    %433 = vmatpush2.msra.mxu0 0.0
    %434 = vmatprep.subr.mxu0 0.0
    %435 = vmatpush2.msra.mxu0 0.0
    %436 = vmatprep.subr.mxu0 0.0
    %437 = vmatpush2.msra.mxu0 0.0
    %438 = vmatprep.mubr.f32.mxu0 0.0
    %439 = vmatmul.mubr.f32.gmra.mxu0 %v372
    %v440 = vpop.f32.mrf.mxu0
    %v441 = vadd.f32 0.0, %v440
    %v442 = vpop.f32.mrf.mxu0
    %443 = vdwg.mxu0
    %v444 = vadd.f32 %v368, %v441
    %v445 = vxor.u32 %v444, 2147483648
    %v446 = vmul.f32 %v445, 1.442695
    %v447 = vpow.pop %v446
    %v448 = vadd.f32 %v447, 1.0
    %v449 = vrcp.pop %v448
    %v450 = vmul.f32 1.0, %v449
    %v451 = vtanh.pop %v444
    %v452 = vmul.f32 %v450, %v360
    %454 = vrot.lane.b32.xlu0 %v451, 64
    %v455 = vpop.permute.xlu0 %454
    %v457 = vmul.f32 %v450, %v455
    %459 = vrot.lane.b32.xlu0 %v457, 32
    %v460 = vpop.permute.xlu0 %459
    %v462 = vadd.f32 %v452, %v460
    %v463 = vtanh.pop %v462
    %465 = vrot.lane.b32.xlu0 %v463, 64
    %v466 = vpop.permute.xlu0 %465
    %v468 = vmul.f32 %v450, %v466
    %s469 = scalar_lea.vmem [#allocation2], 32
    %v470 = vld [vmem:[%s469] sm:$0xff]
    %472 = vrot.lane.b32.xlu0 %v468, 32
    %v473 = vpop.permute.xlu0 %472
    %v474 = vsel %vm64, %v473, 0
    %476 = vmatprep.subr.mxu0 0.0
    %477 = vmatpush1.msra.mxu0 0.0
    %478 = vmatprep.subr.mxu0 0.0
    %479 = vmatpush1.msra.mxu0 0.0
    %480 = vmatprep.subr.mxu0 0.0
    %481 = vmatpush1.msra.mxu0 0.0
    %482 = vmatprep.subr.mxu0 0.0
    %483 = vmatpush1.msra.mxu0 0.0
    %484 = vmatprep.subr.mxu0 0.0
    %485 = vmatpush1.msra.mxu0 0.0
    %486 = vmatprep.subr.mxu0 0.0
    %487 = vmatpush1.msra.mxu0 0.0
    %488 = vmatprep.subr.mxu0 0.0
    %489 = vmatpush1.msra.mxu0 0.0
    %490 = vmatprep.subr.mxu0 0.0
    %491 = vmatpush1.msra.mxu0 0.0
    %492 = vmatprep.subr.mxu0 0.0
    %493 = vmatpush1.msra.mxu0 0.0
    %494 = vmatprep.subr.mxu0 0.0
    %495 = vmatpush1.msra.mxu0 0.0
    %496 = vmatprep.subr.mxu0 0.0
    %497 = vmatpush1.msra.mxu0 0.0
    %498 = vmatprep.subr.mxu0 0.0
    %499 = vmatpush1.msra.mxu0 0.0
    %500 = vmatprep.subr.mxu0 0.0
    %501 = vmatpush1.msra.mxu0 %v62
    %502 = vmatprep.subr.mxu0 0.0
    %503 = vmatpush1.msra.mxu0 %v61
    %504 = vmatprep.subr.mxu0 0.0
    %505 = vmatpush1.msra.mxu0 %v60
    %506 = vmatprep.subr.mxu0 0.0
    %507 = vmatpush1.msra.mxu0 %v59
    %508 = vmatprep.subr.mxu0 0.0
    %509 = vmatpush2.msra.mxu0 0.0
    %510 = vmatprep.subr.mxu0 0.0
    %511 = vmatpush2.msra.mxu0 0.0
    %512 = vmatprep.subr.mxu0 0.0
    %513 = vmatpush2.msra.mxu0 0.0
    %514 = vmatprep.subr.mxu0 0.0
    %515 = vmatpush2.msra.mxu0 0.0
    %516 = vmatprep.subr.mxu0 0.0
    %517 = vmatpush2.msra.mxu0 0.0
    %518 = vmatprep.subr.mxu0 0.0
    %519 = vmatpush2.msra.mxu0 0.0
    %520 = vmatprep.subr.mxu0 0.0
    %521 = vmatpush2.msra.mxu0 0.0
    %522 = vmatprep.subr.mxu0 0.0
    %523 = vmatpush2.msra.mxu0 0.0
    %524 = vmatprep.subr.mxu0 0.0
    %525 = vmatpush2.msra.mxu0 0.0
    %526 = vmatprep.subr.mxu0 0.0
    %527 = vmatpush2.msra.mxu0 0.0
    %528 = vmatprep.subr.mxu0 0.0
    %529 = vmatpush2.msra.mxu0 0.0
    %530 = vmatprep.subr.mxu0 0.0
    %531 = vmatpush2.msra.mxu0 0.0
    %532 = vmatprep.subr.mxu0 0.0
    %533 = vmatpush2.msra.mxu0 0.0
    %534 = vmatprep.subr.mxu0 0.0
    %535 = vmatpush2.msra.mxu0 0.0
    %536 = vmatprep.subr.mxu0 0.0
    %537 = vmatpush2.msra.mxu0 0.0
    %538 = vmatprep.subr.mxu0 0.0
    %539 = vmatpush2.msra.mxu0 0.0
    %540 = vmatprep.mubr.f32.mxu0 0.0
    %541 = vmatmul.mubr.f32.gmra.mxu0 %v474
    %v542 = vpop.f32.mrf.mxu0
    %v543 = vadd.f32 0.0, %v542
    %v544 = vpop.f32.mrf.mxu0
    %545 = vdwg.mxu0
    %v546 = vadd.f32 %v470, %v543
    %v547 = vxor.u32 %v546, 2147483648
    %v548 = vmul.f32 %v547, 1.442695
    %v549 = vpow.pop %v548
    %v550 = vadd.f32 %v549, 1.0
    %v551 = vrcp.pop %v550
    %v552 = vmul.f32 1.0, %v551
    %v553 = vtanh.pop %v546
    %v554 = vmul.f32 %v552, %v462
    %556 = vrot.lane.b32.xlu0 %v553, 64
    %v557 = vpop.permute.xlu0 %556
    %v559 = vmul.f32 %v552, %v557
    %561 = vrot.lane.b32.xlu0 %v559, 32
    %v562 = vpop.permute.xlu0 %561
    %v564 = vadd.f32 %v554, %v562
    %v565 = vtanh.pop %v564
    %567 = vrot.lane.b32.xlu0 %v565, 64
    %v568 = vpop.permute.xlu0 %567
    %v570 = vmul.f32 %v552, %v568
    %s571 = scalar_lea.vmem [#allocation2], 40
    %v572 = vld [vmem:[%s571] sm:$0xff]
    %574 = vrot.lane.b32.xlu0 %v570, 32
    %v575 = vpop.permute.xlu0 %574
    %v576 = vsel %vm64, %v575, 0
    %578 = vmatprep.subr.mxu0 0.0
    %579 = vmatpush1.msra.mxu0 0.0
    %580 = vmatprep.subr.mxu0 0.0
    %581 = vmatpush1.msra.mxu0 0.0
    %582 = vmatprep.subr.mxu0 0.0
    %583 = vmatpush1.msra.mxu0 0.0
    %584 = vmatprep.subr.mxu0 0.0
    %585 = vmatpush1.msra.mxu0 0.0
    %586 = vmatprep.subr.mxu0 0.0
    %587 = vmatpush1.msra.mxu0 0.0
    %588 = vmatprep.subr.mxu0 0.0
    %589 = vmatpush1.msra.mxu0 0.0
    %590 = vmatprep.subr.mxu0 0.0
    %591 = vmatpush1.msra.mxu0 0.0
    %592 = vmatprep.subr.mxu0 0.0
    %593 = vmatpush1.msra.mxu0 0.0
    %594 = vmatprep.subr.mxu0 0.0
    %595 = vmatpush1.msra.mxu0 0.0
    %596 = vmatprep.subr.mxu0 0.0
    %597 = vmatpush1.msra.mxu0 0.0
    %598 = vmatprep.subr.mxu0 0.0
    %599 = vmatpush1.msra.mxu0 0.0
    %600 = vmatprep.subr.mxu0 0.0
    %601 = vmatpush1.msra.mxu0 0.0
    %602 = vmatprep.subr.mxu0 0.0
    %603 = vmatpush1.msra.mxu0 %v62
    %604 = vmatprep.subr.mxu0 0.0
    %605 = vmatpush1.msra.mxu0 %v61
    %606 = vmatprep.subr.mxu0 0.0
    %607 = vmatpush1.msra.mxu0 %v60
    %608 = vmatprep.subr.mxu0 0.0
    %609 = vmatpush1.msra.mxu0 %v59
    %610 = vmatprep.subr.mxu0 0.0
    %611 = vmatpush2.msra.mxu0 0.0
    %612 = vmatprep.subr.mxu0 0.0
    %613 = vmatpush2.msra.mxu0 0.0
    %614 = vmatprep.subr.mxu0 0.0
    %615 = vmatpush2.msra.mxu0 0.0
    %616 = vmatprep.subr.mxu0 0.0
    %617 = vmatpush2.msra.mxu0 0.0
    %618 = vmatprep.subr.mxu0 0.0
    %619 = vmatpush2.msra.mxu0 0.0
    %620 = vmatprep.subr.mxu0 0.0
    %621 = vmatpush2.msra.mxu0 0.0
    %622 = vmatprep.subr.mxu0 0.0
    %623 = vmatpush2.msra.mxu0 0.0
    %624 = vmatprep.subr.mxu0 0.0
    %625 = vmatpush2.msra.mxu0 0.0
    %626 = vmatprep.subr.mxu0 0.0
    %627 = vmatpush2.msra.mxu0 0.0
    %628 = vmatprep.subr.mxu0 0.0
    %629 = vmatpush2.msra.mxu0 0.0
    %630 = vmatprep.subr.mxu0 0.0
    %631 = vmatpush2.msra.mxu0 0.0
    %632 = vmatprep.subr.mxu0 0.0
    %633 = vmatpush2.msra.mxu0 0.0
    %634 = vmatprep.subr.mxu0 0.0
    %635 = vmatpush2.msra.mxu0 0.0
    %636 = vmatprep.subr.mxu0 0.0
    %637 = vmatpush2.msra.mxu0 0.0
    %638 = vmatprep.subr.mxu0 0.0
    %639 = vmatpush2.msra.mxu0 0.0
    %640 = vmatprep.subr.mxu0 0.0
    %641 = vmatpush2.msra.mxu0 0.0
    %642 = vmatprep.mubr.f32.mxu0 0.0
    %643 = vmatmul.mubr.f32.gmra.mxu0 %v576
    %v644 = vpop.f32.mrf.mxu0
    %v645 = vadd.f32 0.0, %v644
    %v646 = vpop.f32.mrf.mxu0
    %647 = vdwg.mxu0
    %v648 = vadd.f32 %v572, %v645
    %v649 = vxor.u32 %v648, 2147483648
    %v650 = vmul.f32 %v649, 1.442695
    %v651 = vpow.pop %v650
    %v652 = vadd.f32 %v651, 1.0
    %v653 = vrcp.pop %v652
    %v654 = vmul.f32 1.0, %v653
    %v655 = vtanh.pop %v648
    %v656 = vmul.f32 %v654, %v564
    %658 = vrot.lane.b32.xlu0 %v655, 64
    %v659 = vpop.permute.xlu0 %658
    %v661 = vmul.f32 %v654, %v659
    %663 = vrot.lane.b32.xlu0 %v661, 32
    %v664 = vpop.permute.xlu0 %663
    %v666 = vadd.f32 %v656, %v664
    %v667 = vtanh.pop %v666
    %669 = vrot.lane.b32.xlu0 %v667, 64
    %v670 = vpop.permute.xlu0 %669
    %v672 = vmul.f32 %v654, %v670
    %s673 = scalar_lea.vmem [#allocation2], 48
    %v674 = vld [vmem:[%s673] sm:$0xff]
    %676 = vrot.lane.b32.xlu0 %v672, 32
    %v677 = vpop.permute.xlu0 %676
    %v678 = vsel %vm64, %v677, 0
    %680 = vmatprep.subr.mxu0 0.0
    %681 = vmatpush1.msra.mxu0 0.0
    %682 = vmatprep.subr.mxu0 0.0
    %683 = vmatpush1.msra.mxu0 0.0
    %684 = vmatprep.subr.mxu0 0.0
    %685 = vmatpush1.msra.mxu0 0.0
    %686 = vmatprep.subr.mxu0 0.0
    %687 = vmatpush1.msra.mxu0 0.0
    %688 = vmatprep.subr.mxu0 0.0
    %689 = vmatpush1.msra.mxu0 0.0
    %690 = vmatprep.subr.mxu0 0.0
    %691 = vmatpush1.msra.mxu0 0.0
    %692 = vmatprep.subr.mxu0 0.0
    %693 = vmatpush1.msra.mxu0 0.0
    %694 = vmatprep.subr.mxu0 0.0
    %695 = vmatpush1.msra.mxu0 0.0
    %696 = vmatprep.subr.mxu0 0.0
    %697 = vmatpush1.msra.mxu0 0.0
    %698 = vmatprep.subr.mxu0 0.0
    %699 = vmatpush1.msra.mxu0 0.0
    %700 = vmatprep.subr.mxu0 0.0
    %701 = vmatpush1.msra.mxu0 0.0
    %702 = vmatprep.subr.mxu0 0.0
    %703 = vmatpush1.msra.mxu0 0.0
    %704 = vmatprep.subr.mxu0 0.0
    %705 = vmatpush1.msra.mxu0 %v62
    %706 = vmatprep.subr.mxu0 0.0
    %707 = vmatpush1.msra.mxu0 %v61
    %708 = vmatprep.subr.mxu0 0.0
    %709 = vmatpush1.msra.mxu0 %v60
    %710 = vmatprep.subr.mxu0 0.0
    %711 = vmatpush1.msra.mxu0 %v59
    %712 = vmatprep.subr.mxu0 0.0
    %713 = vmatpush2.msra.mxu0 0.0
    %714 = vmatprep.subr.mxu0 0.0
    %715 = vmatpush2.msra.mxu0 0.0
    %716 = vmatprep.subr.mxu0 0.0
    %717 = vmatpush2.msra.mxu0 0.0
    %718 = vmatprep.subr.mxu0 0.0
    %719 = vmatpush2.msra.mxu0 0.0
    %720 = vmatprep.subr.mxu0 0.0
    %721 = vmatpush2.msra.mxu0 0.0
    %722 = vmatprep.subr.mxu0 0.0
    %723 = vmatpush2.msra.mxu0 0.0
    %724 = vmatprep.subr.mxu0 0.0
    %725 = vmatpush2.msra.mxu0 0.0
    %726 = vmatprep.subr.mxu0 0.0
    %727 = vmatpush2.msra.mxu0 0.0
    %728 = vmatprep.subr.mxu0 0.0
    %729 = vmatpush2.msra.mxu0 0.0
    %730 = vmatprep.subr.mxu0 0.0
    %731 = vmatpush2.msra.mxu0 0.0
    %732 = vmatprep.subr.mxu0 0.0
    %733 = vmatpush2.msra.mxu0 0.0
    %734 = vmatprep.subr.mxu0 0.0
    %735 = vmatpush2.msra.mxu0 0.0
    %736 = vmatprep.subr.mxu0 0.0
    %737 = vmatpush2.msra.mxu0 0.0
    %738 = vmatprep.subr.mxu0 0.0
    %739 = vmatpush2.msra.mxu0 0.0
    %740 = vmatprep.subr.mxu0 0.0
    %741 = vmatpush2.msra.mxu0 0.0
    %742 = vmatprep.subr.mxu0 0.0
    %743 = vmatpush2.msra.mxu0 0.0
    %744 = vmatprep.mubr.f32.mxu0 0.0
    %745 = vmatmul.mubr.f32.gmra.mxu0 %v678
    %v746 = vpop.f32.mrf.mxu0
    %v747 = vadd.f32 0.0, %v746
    %v748 = vpop.f32.mrf.mxu0
    %749 = vdwg.mxu0
    %v750 = vadd.f32 %v674, %v747
    %v751 = vxor.u32 %v750, 2147483648
    %v752 = vmul.f32 %v751, 1.442695
    %v753 = vpow.pop %v752
    %v754 = vadd.f32 %v753, 1.0
    %v755 = vrcp.pop %v754
    %v756 = vmul.f32 1.0, %v755
    %v757 = vtanh.pop %v750
    %v758 = vmul.f32 %v756, %v666
    %760 = vrot.lane.b32.xlu0 %v757, 64
    %v761 = vpop.permute.xlu0 %760
    %v763 = vmul.f32 %v756, %v761
    %765 = vrot.lane.b32.xlu0 %v763, 32
    %v766 = vpop.permute.xlu0 %765
    %v768 = vadd.f32 %v758, %v766
    %v769 = vtanh.pop %v768
    %771 = vrot.lane.b32.xlu0 %v769, 64
    %v772 = vpop.permute.xlu0 %771
    %v774 = vmul.f32 %v756, %v772
    %s775 = scalar_lea.vmem [#allocation2], 56
    %v776 = vld [vmem:[%s775] sm:$0xff]
    %778 = vrot.lane.b32.xlu0 %v774, 32
    %v779 = vpop.permute.xlu0 %778
    %v780 = vsel %vm64, %v779, 0
    %782 = vmatprep.subr.mxu0 0.0
    %783 = vmatpush1.msra.mxu0 0.0
    %784 = vmatprep.subr.mxu0 0.0
    %785 = vmatpush1.msra.mxu0 0.0
    %786 = vmatprep.subr.mxu0 0.0
    %787 = vmatpush1.msra.mxu0 0.0
    %788 = vmatprep.subr.mxu0 0.0
    %789 = vmatpush1.msra.mxu0 0.0
    %790 = vmatprep.subr.mxu0 0.0
    %791 = vmatpush1.msra.mxu0 0.0
    %792 = vmatprep.subr.mxu0 0.0
    %793 = vmatpush1.msra.mxu0 0.0
    %794 = vmatprep.subr.mxu0 0.0
    %795 = vmatpush1.msra.mxu0 0.0
    %796 = vmatprep.subr.mxu0 0.0
    %797 = vmatpush1.msra.mxu0 0.0
    %798 = vmatprep.subr.mxu0 0.0
    %799 = vmatpush1.msra.mxu0 0.0
    %800 = vmatprep.subr.mxu0 0.0
    %801 = vmatpush1.msra.mxu0 0.0
    %802 = vmatprep.subr.mxu0 0.0
    %803 = vmatpush1.msra.mxu0 0.0
    %804 = vmatprep.subr.mxu0 0.0
    %805 = vmatpush1.msra.mxu0 0.0
    %806 = vmatprep.subr.mxu0 0.0
    %807 = vmatpush1.msra.mxu0 %v62
    %808 = vmatprep.subr.mxu0 0.0
    %809 = vmatpush1.msra.mxu0 %v61
    %810 = vmatprep.subr.mxu0 0.0
    %811 = vmatpush1.msra.mxu0 %v60
    %812 = vmatprep.subr.mxu0 0.0
    %813 = vmatpush1.msra.mxu0 %v59
    %814 = vmatprep.subr.mxu0 0.0
    %815 = vmatpush2.msra.mxu0 0.0
    %816 = vmatprep.subr.mxu0 0.0
    %817 = vmatpush2.msra.mxu0 0.0
    %818 = vmatprep.subr.mxu0 0.0
    %819 = vmatpush2.msra.mxu0 0.0
    %820 = vmatprep.subr.mxu0 0.0
    %821 = vmatpush2.msra.mxu0 0.0
    %822 = vmatprep.subr.mxu0 0.0
    %823 = vmatpush2.msra.mxu0 0.0
    %824 = vmatprep.subr.mxu0 0.0
    %825 = vmatpush2.msra.mxu0 0.0
    %826 = vmatprep.subr.mxu0 0.0
    %827 = vmatpush2.msra.mxu0 0.0
    %828 = vmatprep.subr.mxu0 0.0
    %829 = vmatpush2.msra.mxu0 0.0
    %830 = vmatprep.subr.mxu0 0.0
    %831 = vmatpush2.msra.mxu0 0.0
    %832 = vmatprep.subr.mxu0 0.0
    %833 = vmatpush2.msra.mxu0 0.0
    %834 = vmatprep.subr.mxu0 0.0
    %835 = vmatpush2.msra.mxu0 0.0
    %836 = vmatprep.subr.mxu0 0.0
    %837 = vmatpush2.msra.mxu0 0.0
    %838 = vmatprep.subr.mxu0 0.0
    %839 = vmatpush2.msra.mxu0 0.0
    %840 = vmatprep.subr.mxu0 0.0
    %841 = vmatpush2.msra.mxu0 0.0
    %842 = vmatprep.subr.mxu0 0.0
    %843 = vmatpush2.msra.mxu0 0.0
    %844 = vmatprep.subr.mxu0 0.0
    %845 = vmatpush2.msra.mxu0 0.0
    %846 = vmatprep.mubr.f32.mxu0 0.0
    %847 = vmatmul.mubr.f32.gmra.mxu0 %v780
    %v848 = vpop.f32.mrf.mxu0
    %v849 = vadd.f32 0.0, %v848
    %v850 = vpop.f32.mrf.mxu0
    %851 = vdwg.mxu0
    %v852 = vadd.f32 %v776, %v849
    %v853 = vxor.u32 %v852, 2147483648
    %v854 = vmul.f32 %v853, 1.442695
    %v855 = vpow.pop %v854
    %v856 = vadd.f32 %v855, 1.0
    %v857 = vrcp.pop %v856
    %v858 = vmul.f32 1.0, %v857
    %v859 = vtanh.pop %v852
    %v860 = vmul.f32 %v858, %v768
    %862 = vrot.lane.b32.xlu0 %v859, 64
    %v863 = vpop.permute.xlu0 %862
    %v865 = vmul.f32 %v858, %v863
    %867 = vrot.lane.b32.xlu0 %v865, 32
    %v868 = vpop.permute.xlu0 %867
    %v870 = vadd.f32 %v860, %v868
    %v871 = vtanh.pop %v870
    %873 = vrot.lane.b32.xlu0 %v871, 64
    %v874 = vpop.permute.xlu0 %873
    %v876 = vmul.f32 %v858, %v874
    %s877 = scalar_lea.vmem [#allocation2], 64
    %v878 = vld [vmem:[%s877] sm:$0xff]
    %880 = vrot.lane.b32.xlu0 %v876, 32
    %v881 = vpop.permute.xlu0 %880
    %v882 = vsel %vm64, %v881, 0
    %884 = vmatprep.subr.mxu0 0.0
    %885 = vmatpush1.msra.mxu0 0.0
    %886 = vmatprep.subr.mxu0 0.0
    %887 = vmatpush1.msra.mxu0 0.0
    %888 = vmatprep.subr.mxu0 0.0
    %889 = vmatpush1.msra.mxu0 0.0
    %890 = vmatprep.subr.mxu0 0.0
    %891 = vmatpush1.msra.mxu0 0.0
    %892 = vmatprep.subr.mxu0 0.0
    %893 = vmatpush1.msra.mxu0 0.0
    %894 = vmatprep.subr.mxu0 0.0
    %895 = vmatpush1.msra.mxu0 0.0
    %896 = vmatprep.subr.mxu0 0.0
    %897 = vmatpush1.msra.mxu0 0.0
    %898 = vmatprep.subr.mxu0 0.0
    %899 = vmatpush1.msra.mxu0 0.0
    %900 = vmatprep.subr.mxu0 0.0
    %901 = vmatpush1.msra.mxu0 0.0
    %902 = vmatprep.subr.mxu0 0.0
    %903 = vmatpush1.msra.mxu0 0.0
    %904 = vmatprep.subr.mxu0 0.0
    %905 = vmatpush1.msra.mxu0 0.0
    %906 = vmatprep.subr.mxu0 0.0
    %907 = vmatpush1.msra.mxu0 0.0
    %908 = vmatprep.subr.mxu0 0.0
    %909 = vmatpush1.msra.mxu0 %v62
    %910 = vmatprep.subr.mxu0 0.0
    %911 = vmatpush1.msra.mxu0 %v61
    %912 = vmatprep.subr.mxu0 0.0
    %913 = vmatpush1.msra.mxu0 %v60
    %914 = vmatprep.subr.mxu0 0.0
    %915 = vmatpush1.msra.mxu0 %v59
    %916 = vmatprep.subr.mxu0 0.0
    %917 = vmatpush2.msra.mxu0 0.0
    %918 = vmatprep.subr.mxu0 0.0
    %919 = vmatpush2.msra.mxu0 0.0
    %920 = vmatprep.subr.mxu0 0.0
    %921 = vmatpush2.msra.mxu0 0.0
    %922 = vmatprep.subr.mxu0 0.0
    %923 = vmatpush2.msra.mxu0 0.0
    %924 = vmatprep.subr.mxu0 0.0
    %925 = vmatpush2.msra.mxu0 0.0
    %926 = vmatprep.subr.mxu0 0.0
    %927 = vmatpush2.msra.mxu0 0.0
    %928 = vmatprep.subr.mxu0 0.0
    %929 = vmatpush2.msra.mxu0 0.0
    %930 = vmatprep.subr.mxu0 0.0
    %931 = vmatpush2.msra.mxu0 0.0
    %932 = vmatprep.subr.mxu0 0.0
    %933 = vmatpush2.msra.mxu0 0.0
    %934 = vmatprep.subr.mxu0 0.0
    %935 = vmatpush2.msra.mxu0 0.0
    %936 = vmatprep.subr.mxu0 0.0
    %937 = vmatpush2.msra.mxu0 0.0
    %938 = vmatprep.subr.mxu0 0.0
    %939 = vmatpush2.msra.mxu0 0.0
    %940 = vmatprep.subr.mxu0 0.0
    %941 = vmatpush2.msra.mxu0 0.0
    %942 = vmatprep.subr.mxu0 0.0
    %943 = vmatpush2.msra.mxu0 0.0
    %944 = vmatprep.subr.mxu0 0.0
    %945 = vmatpush2.msra.mxu0 0.0
    %946 = vmatprep.subr.mxu0 0.0
    %947 = vmatpush2.msra.mxu0 0.0
    %948 = vmatprep.mubr.f32.mxu0 0.0
    %949 = vmatmul.mubr.f32.gmra.mxu0 %v882
    %v950 = vpop.f32.mrf.mxu0
    %v951 = vadd.f32 0.0, %v950
    %v952 = vpop.f32.mrf.mxu0
    %953 = vdwg.mxu0
    %v954 = vadd.f32 %v878, %v951
    %v955 = vxor.u32 %v954, 2147483648
    %v956 = vmul.f32 %v955, 1.442695
    %v957 = vpow.pop %v956
    %v958 = vadd.f32 %v957, 1.0
    %v959 = vrcp.pop %v958
    %v960 = vmul.f32 1.0, %v959
    %v961 = vtanh.pop %v954
    %v962 = vmul.f32 %v960, %v870
    %964 = vrot.lane.b32.xlu0 %v961, 64
    %v965 = vpop.permute.xlu0 %964
    %v967 = vmul.f32 %v960, %v965
    %969 = vrot.lane.b32.xlu0 %v967, 32
    %v970 = vpop.permute.xlu0 %969
    %v972 = vadd.f32 %v962, %v970
    %v973 = vtanh.pop %v972
    %975 = vrot.lane.b32.xlu0 %v973, 64
    %v976 = vpop.permute.xlu0 %975
    %v978 = vmul.f32 %v960, %v976
    %s979 = scalar_lea.vmem [#allocation2], 72
    %v980 = vld [vmem:[%s979] sm:$0xff]
    %982 = vrot.lane.b32.xlu0 %v978, 32
    %v983 = vpop.permute.xlu0 %982
    %v984 = vsel %vm64, %v983, 0
    %986 = vmatprep.subr.mxu0 0.0
    %987 = vmatpush1.msra.mxu0 0.0
    %988 = vmatprep.subr.mxu0 0.0
    %989 = vmatpush1.msra.mxu0 0.0
    %990 = vmatprep.subr.mxu0 0.0
    %991 = vmatpush1.msra.mxu0 0.0
    %992 = vmatprep.subr.mxu0 0.0
    %993 = vmatpush1.msra.mxu0 0.0
    %994 = vmatprep.subr.mxu0 0.0
    %995 = vmatpush1.msra.mxu0 0.0
    %996 = vmatprep.subr.mxu0 0.0
    %997 = vmatpush1.msra.mxu0 0.0
    %998 = vmatprep.subr.mxu0 0.0
    %999 = vmatpush1.msra.mxu0 0.0
    %1000 = vmatprep.subr.mxu0 0.0
    %1001 = vmatpush1.msra.mxu0 0.0
    %1002 = vmatprep.subr.mxu0 0.0
    %1003 = vmatpush1.msra.mxu0 0.0
    %1004 = vmatprep.subr.mxu0 0.0
    %1005 = vmatpush1.msra.mxu0 0.0
    %1006 = vmatprep.subr.mxu0 0.0
    %1007 = vmatpush1.msra.mxu0 0.0
    %1008 = vmatprep.subr.mxu0 0.0
    %1009 = vmatpush1.msra.mxu0 0.0
    %1010 = vmatprep.subr.mxu0 0.0
    %1011 = vmatpush1.msra.mxu0 %v62
    %1012 = vmatprep.subr.mxu0 0.0
    %1013 = vmatpush1.msra.mxu0 %v61
    %1014 = vmatprep.subr.mxu0 0.0
    %1015 = vmatpush1.msra.mxu0 %v60
    %1016 = vmatprep.subr.mxu0 0.0
    %1017 = vmatpush1.msra.mxu0 %v59
    %1018 = vmatprep.subr.mxu0 0.0
    %1019 = vmatpush2.msra.mxu0 0.0
    %1020 = vmatprep.subr.mxu0 0.0
    %1021 = vmatpush2.msra.mxu0 0.0
    %1022 = vmatprep.subr.mxu0 0.0
    %1023 = vmatpush2.msra.mxu0 0.0
    %1024 = vmatprep.subr.mxu0 0.0
    %1025 = vmatpush2.msra.mxu0 0.0
    %1026 = vmatprep.subr.mxu0 0.0
    %1027 = vmatpush2.msra.mxu0 0.0
    %1028 = vmatprep.subr.mxu0 0.0
    %1029 = vmatpush2.msra.mxu0 0.0
    %1030 = vmatprep.subr.mxu0 0.0
    %1031 = vmatpush2.msra.mxu0 0.0
    %1032 = vmatprep.subr.mxu0 0.0
    %1033 = vmatpush2.msra.mxu0 0.0
    %1034 = vmatprep.subr.mxu0 0.0
    %1035 = vmatpush2.msra.mxu0 0.0
    %1036 = vmatprep.subr.mxu0 0.0
    %1037 = vmatpush2.msra.mxu0 0.0
    %1038 = vmatprep.subr.mxu0 0.0
    %1039 = vmatpush2.msra.mxu0 0.0
    %1040 = vmatprep.subr.mxu0 0.0
    %1041 = vmatpush2.msra.mxu0 0.0
    %1042 = vmatprep.subr.mxu0 0.0
    %1043 = vmatpush2.msra.mxu0 0.0
    %1044 = vmatprep.subr.mxu0 0.0
    %1045 = vmatpush2.msra.mxu0 0.0
    %1046 = vmatprep.subr.mxu0 0.0
    %1047 = vmatpush2.msra.mxu0 0.0
    %1048 = vmatprep.subr.mxu0 0.0
    %1049 = vmatpush2.msra.mxu0 0.0
    %1050 = vmatprep.mubr.f32.mxu0 0.0
    %1051 = vmatmul.mubr.f32.gmra.mxu0 %v984
    %v1052 = vpop.f32.mrf.mxu0
    %v1053 = vadd.f32 0.0, %v1052
    %v1054 = vpop.f32.mrf.mxu0
    %1055 = vdwg.mxu0
    %v1056 = vadd.f32 %v980, %v1053
    %v1057 = vxor.u32 %v1056, 2147483648
    %v1058 = vmul.f32 %v1057, 1.442695
    %v1059 = vpow.pop %v1058
    %v1060 = vadd.f32 %v1059, 1.0
    %v1061 = vrcp.pop %v1060
    %v1062 = vmul.f32 1.0, %v1061
    %v1063 = vtanh.pop %v1056
    %v1064 = vmul.f32 %v1062, %v972
    %1066 = vrot.lane.b32.xlu0 %v1063, 64
    %v1067 = vpop.permute.xlu0 %1066
    %v1069 = vmul.f32 %v1062, %v1067
    %1071 = vrot.lane.b32.xlu0 %v1069, 32
    %v1072 = vpop.permute.xlu0 %1071
    %v1074 = vadd.f32 %v1064, %v1072
    %v1075 = vtanh.pop %v1074
    %1077 = vrot.lane.b32.xlu0 %v1075, 64
    %v1078 = vpop.permute.xlu0 %1077
    %v1080 = vmul.f32 %v1062, %v1078
    %s1081 = scalar_lea.vmem [#allocation2], 80
    %v1082 = vld [vmem:[%s1081] sm:$0xff]
    %1084 = vrot.lane.b32.xlu0 %v1080, 32
    %v1085 = vpop.permute.xlu0 %1084
    %v1086 = vsel %vm64, %v1085, 0
    %1088 = vmatprep.subr.mxu0 0.0
    %1089 = vmatpush1.msra.mxu0 0.0
    %1090 = vmatprep.subr.mxu0 0.0
    %1091 = vmatpush1.msra.mxu0 0.0
    %1092 = vmatprep.subr.mxu0 0.0
    %1093 = vmatpush1.msra.mxu0 0.0
    %1094 = vmatprep.subr.mxu0 0.0
    %1095 = vmatpush1.msra.mxu0 0.0
    %1096 = vmatprep.subr.mxu0 0.0
    %1097 = vmatpush1.msra.mxu0 0.0
    %1098 = vmatprep.subr.mxu0 0.0
    %1099 = vmatpush1.msra.mxu0 0.0
    %1100 = vmatprep.subr.mxu0 0.0
    %1101 = vmatpush1.msra.mxu0 0.0
    %1102 = vmatprep.subr.mxu0 0.0
    %1103 = vmatpush1.msra.mxu0 0.0
    %1104 = vmatprep.subr.mxu0 0.0
    %1105 = vmatpush1.msra.mxu0 0.0
    %1106 = vmatprep.subr.mxu0 0.0
    %1107 = vmatpush1.msra.mxu0 0.0
    %1108 = vmatprep.subr.mxu0 0.0
    %1109 = vmatpush1.msra.mxu0 0.0
    %1110 = vmatprep.subr.mxu0 0.0
    %1111 = vmatpush1.msra.mxu0 0.0
    %1112 = vmatprep.subr.mxu0 0.0
    %1113 = vmatpush1.msra.mxu0 %v62
    %1114 = vmatprep.subr.mxu0 0.0
    %1115 = vmatpush1.msra.mxu0 %v61
    %1116 = vmatprep.subr.mxu0 0.0
    %1117 = vmatpush1.msra.mxu0 %v60
    %1118 = vmatprep.subr.mxu0 0.0
    %1119 = vmatpush1.msra.mxu0 %v59
    %1120 = vmatprep.subr.mxu0 0.0
    %1121 = vmatpush2.msra.mxu0 0.0
    %1122 = vmatprep.subr.mxu0 0.0
    %1123 = vmatpush2.msra.mxu0 0.0
    %1124 = vmatprep.subr.mxu0 0.0
    %1125 = vmatpush2.msra.mxu0 0.0
    %1126 = vmatprep.subr.mxu0 0.0
    %1127 = vmatpush2.msra.mxu0 0.0
    %1128 = vmatprep.subr.mxu0 0.0
    %1129 = vmatpush2.msra.mxu0 0.0
    %1130 = vmatprep.subr.mxu0 0.0
    %1131 = vmatpush2.msra.mxu0 0.0
    %1132 = vmatprep.subr.mxu0 0.0
    %1133 = vmatpush2.msra.mxu0 0.0
    %1134 = vmatprep.subr.mxu0 0.0
    %1135 = vmatpush2.msra.mxu0 0.0
    %1136 = vmatprep.subr.mxu0 0.0
    %1137 = vmatpush2.msra.mxu0 0.0
    %1138 = vmatprep.subr.mxu0 0.0
    %1139 = vmatpush2.msra.mxu0 0.0
    %1140 = vmatprep.subr.mxu0 0.0
    %1141 = vmatpush2.msra.mxu0 0.0
    %1142 = vmatprep.subr.mxu0 0.0
    %1143 = vmatpush2.msra.mxu0 0.0
    %1144 = vmatprep.subr.mxu0 0.0
    %1145 = vmatpush2.msra.mxu0 0.0
    %1146 = vmatprep.subr.mxu0 0.0
    %1147 = vmatpush2.msra.mxu0 0.0
    %1148 = vmatprep.subr.mxu0 0.0
    %1149 = vmatpush2.msra.mxu0 0.0
    %1150 = vmatprep.subr.mxu0 0.0
    %1151 = vmatpush2.msra.mxu0 0.0
    %1152 = vmatprep.mubr.f32.mxu0 0.0
    %1153 = vmatmul.mubr.f32.gmra.mxu0 %v1086
    %v1154 = vpop.f32.mrf.mxu0
    %v1155 = vadd.f32 0.0, %v1154
    %v1156 = vpop.f32.mrf.mxu0
    %1157 = vdwg.mxu0
    %v1158 = vadd.f32 %v1082, %v1155
    %v1159 = vxor.u32 %v1158, 2147483648
    %v1160 = vmul.f32 %v1159, 1.442695
    %v1161 = vpow.pop %v1160
    %v1162 = vadd.f32 %v1161, 1.0
    %v1163 = vrcp.pop %v1162
    %v1164 = vmul.f32 1.0, %v1163
    %v1165 = vtanh.pop %v1158
    %v1166 = vmul.f32 %v1164, %v1074
    %1168 = vrot.lane.b32.xlu0 %v1165, 64
    %v1169 = vpop.permute.xlu0 %1168
    %v1171 = vmul.f32 %v1164, %v1169
    %1173 = vrot.lane.b32.xlu0 %v1171, 32
    %v1174 = vpop.permute.xlu0 %1173
    %v1176 = vadd.f32 %v1166, %v1174
    %v1177 = vtanh.pop %v1176
    %1179 = vrot.lane.b32.xlu0 %v1177, 64
    %v1180 = vpop.permute.xlu0 %1179
    %v1182 = vmul.f32 %v1164, %v1180
    %s1183 = scalar_lea.vmem [#allocation2], 88
    %v1184 = vld [vmem:[%s1183] sm:$0xff]
    %1186 = vrot.lane.b32.xlu0 %v1182, 32
    %v1187 = vpop.permute.xlu0 %1186
    %v1188 = vsel %vm64, %v1187, 0
    %1190 = vmatprep.subr.mxu0 0.0
    %1191 = vmatpush1.msra.mxu0 0.0
    %1192 = vmatprep.subr.mxu0 0.0
    %1193 = vmatpush1.msra.mxu0 0.0
    %1194 = vmatprep.subr.mxu0 0.0
    %1195 = vmatpush1.msra.mxu0 0.0
    %1196 = vmatprep.subr.mxu0 0.0
    %1197 = vmatpush1.msra.mxu0 0.0
    %1198 = vmatprep.subr.mxu0 0.0
    %1199 = vmatpush1.msra.mxu0 0.0
    %1200 = vmatprep.subr.mxu0 0.0
    %1201 = vmatpush1.msra.mxu0 0.0
    %1202 = vmatprep.subr.mxu0 0.0
    %1203 = vmatpush1.msra.mxu0 0.0
    %1204 = vmatprep.subr.mxu0 0.0
    %1205 = vmatpush1.msra.mxu0 0.0
    %1206 = vmatprep.subr.mxu0 0.0
    %1207 = vmatpush1.msra.mxu0 0.0
    %1208 = vmatprep.subr.mxu0 0.0
    %1209 = vmatpush1.msra.mxu0 0.0
    %1210 = vmatprep.subr.mxu0 0.0
    %1211 = vmatpush1.msra.mxu0 0.0
    %1212 = vmatprep.subr.mxu0 0.0
    %1213 = vmatpush1.msra.mxu0 0.0
    %1214 = vmatprep.subr.mxu0 0.0
    %1215 = vmatpush1.msra.mxu0 %v62
    %1216 = vmatprep.subr.mxu0 0.0
    %1217 = vmatpush1.msra.mxu0 %v61
    %1218 = vmatprep.subr.mxu0 0.0
    %1219 = vmatpush1.msra.mxu0 %v60
    %1220 = vmatprep.subr.mxu0 0.0
    %1221 = vmatpush1.msra.mxu0 %v59
    %1222 = vmatprep.subr.mxu0 0.0
    %1223 = vmatpush2.msra.mxu0 0.0
    %1224 = vmatprep.subr.mxu0 0.0
    %1225 = vmatpush2.msra.mxu0 0.0
    %1226 = vmatprep.subr.mxu0 0.0
    %1227 = vmatpush2.msra.mxu0 0.0
    %1228 = vmatprep.subr.mxu0 0.0
    %1229 = vmatpush2.msra.mxu0 0.0
    %1230 = vmatprep.subr.mxu0 0.0
    %1231 = vmatpush2.msra.mxu0 0.0
    %1232 = vmatprep.subr.mxu0 0.0
    %1233 = vmatpush2.msra.mxu0 0.0
    %1234 = vmatprep.subr.mxu0 0.0
    %1235 = vmatpush2.msra.mxu0 0.0
    %1236 = vmatprep.subr.mxu0 0.0
    %1237 = vmatpush2.msra.mxu0 0.0
    %1238 = vmatprep.subr.mxu0 0.0
    %1239 = vmatpush2.msra.mxu0 0.0
    %1240 = vmatprep.subr.mxu0 0.0
    %1241 = vmatpush2.msra.mxu0 0.0
    %1242 = vmatprep.subr.mxu0 0.0
    %1243 = vmatpush2.msra.mxu0 0.0
    %1244 = vmatprep.subr.mxu0 0.0
    %1245 = vmatpush2.msra.mxu0 0.0
    %1246 = vmatprep.subr.mxu0 0.0
    %1247 = vmatpush2.msra.mxu0 0.0
    %1248 = vmatprep.subr.mxu0 0.0
    %1249 = vmatpush2.msra.mxu0 0.0
    %1250 = vmatprep.subr.mxu0 0.0
    %1251 = vmatpush2.msra.mxu0 0.0
    %1252 = vmatprep.subr.mxu0 0.0
    %1253 = vmatpush2.msra.mxu0 0.0
    %1254 = vmatprep.mubr.f32.mxu0 0.0
    %1255 = vmatmul.mubr.f32.gmra.mxu0 %v1188
    %v1256 = vpop.f32.mrf.mxu0
    %v1257 = vadd.f32 0.0, %v1256
    %v1258 = vpop.f32.mrf.mxu0
    %1259 = vdwg.mxu0
    %v1260 = vadd.f32 %v1184, %v1257
    %v1261 = vxor.u32 %v1260, 2147483648
    %v1262 = vmul.f32 %v1261, 1.442695
    %v1263 = vpow.pop %v1262
    %v1264 = vadd.f32 %v1263, 1.0
    %v1265 = vrcp.pop %v1264
    %v1266 = vmul.f32 1.0, %v1265
    %v1267 = vtanh.pop %v1260
    %v1268 = vmul.f32 %v1266, %v1176
    %1270 = vrot.lane.b32.xlu0 %v1267, 64
    %v1271 = vpop.permute.xlu0 %1270
    %v1273 = vmul.f32 %v1266, %v1271
    %1275 = vrot.lane.b32.xlu0 %v1273, 32
    %v1276 = vpop.permute.xlu0 %1275
    %v1278 = vadd.f32 %v1268, %v1276
    %v1279 = vtanh.pop %v1278
    %1281 = vrot.lane.b32.xlu0 %v1279, 64
    %v1282 = vpop.permute.xlu0 %1281
    %v1284 = vmul.f32 %v1266, %v1282
    %s1285 = scalar_lea.vmem [#allocation2], 96
    %v1286 = vld [vmem:[%s1285] sm:$0xff]
    %1288 = vrot.lane.b32.xlu0 %v1284, 32
    %v1289 = vpop.permute.xlu0 %1288
    %v1290 = vsel %vm64, %v1289, 0
    %1292 = vmatprep.subr.mxu0 0.0
    %1293 = vmatpush1.msra.mxu0 0.0
    %1294 = vmatprep.subr.mxu0 0.0
    %1295 = vmatpush1.msra.mxu0 0.0
    %1296 = vmatprep.subr.mxu0 0.0
    %1297 = vmatpush1.msra.mxu0 0.0
    %1298 = vmatprep.subr.mxu0 0.0
    %1299 = vmatpush1.msra.mxu0 0.0
    %1300 = vmatprep.subr.mxu0 0.0
    %1301 = vmatpush1.msra.mxu0 0.0
    %1302 = vmatprep.subr.mxu0 0.0
    %1303 = vmatpush1.msra.mxu0 0.0
    %1304 = vmatprep.subr.mxu0 0.0
    %1305 = vmatpush1.msra.mxu0 0.0
    %1306 = vmatprep.subr.mxu0 0.0
    %1307 = vmatpush1.msra.mxu0 0.0
    %1308 = vmatprep.subr.mxu0 0.0
    %1309 = vmatpush1.msra.mxu0 0.0
    %1310 = vmatprep.subr.mxu0 0.0
    %1311 = vmatpush1.msra.mxu0 0.0
    %1312 = vmatprep.subr.mxu0 0.0
    %1313 = vmatpush1.msra.mxu0 0.0
    %1314 = vmatprep.subr.mxu0 0.0
    %1315 = vmatpush1.msra.mxu0 0.0
    %1316 = vmatprep.subr.mxu0 0.0
    %1317 = vmatpush1.msra.mxu0 %v62
    %1318 = vmatprep.subr.mxu0 0.0
    %1319 = vmatpush1.msra.mxu0 %v61
    %1320 = vmatprep.subr.mxu0 0.0
    %1321 = vmatpush1.msra.mxu0 %v60
    %1322 = vmatprep.subr.mxu0 0.0
    %1323 = vmatpush1.msra.mxu0 %v59
    %1324 = vmatprep.subr.mxu0 0.0
    %1325 = vmatpush2.msra.mxu0 0.0
    %1326 = vmatprep.subr.mxu0 0.0
    %1327 = vmatpush2.msra.mxu0 0.0
    %1328 = vmatprep.subr.mxu0 0.0
    %1329 = vmatpush2.msra.mxu0 0.0
    %1330 = vmatprep.subr.mxu0 0.0
    %1331 = vmatpush2.msra.mxu0 0.0
    %1332 = vmatprep.subr.mxu0 0.0
    %1333 = vmatpush2.msra.mxu0 0.0
    %1334 = vmatprep.subr.mxu0 0.0
    %1335 = vmatpush2.msra.mxu0 0.0
    %1336 = vmatprep.subr.mxu0 0.0
    %1337 = vmatpush2.msra.mxu0 0.0
    %1338 = vmatprep.subr.mxu0 0.0
    %1339 = vmatpush2.msra.mxu0 0.0
    %1340 = vmatprep.subr.mxu0 0.0
    %1341 = vmatpush2.msra.mxu0 0.0
    %1342 = vmatprep.subr.mxu0 0.0
    %1343 = vmatpush2.msra.mxu0 0.0
    %1344 = vmatprep.subr.mxu0 0.0
    %1345 = vmatpush2.msra.mxu0 0.0
    %1346 = vmatprep.subr.mxu0 0.0
    %1347 = vmatpush2.msra.mxu0 0.0
    %1348 = vmatprep.subr.mxu0 0.0
    %1349 = vmatpush2.msra.mxu0 0.0
    %1350 = vmatprep.subr.mxu0 0.0
    %1351 = vmatpush2.msra.mxu0 0.0
    %1352 = vmatprep.subr.mxu0 0.0
    %1353 = vmatpush2.msra.mxu0 0.0
    %1354 = vmatprep.subr.mxu0 0.0
    %1355 = vmatpush2.msra.mxu0 0.0
    %1356 = vmatprep.mubr.f32.mxu0 0.0
    %1357 = vmatmul.mubr.f32.gmra.mxu0 %v1290
    %v1358 = vpop.f32.mrf.mxu0
    %v1359 = vadd.f32 0.0, %v1358
    %v1360 = vpop.f32.mrf.mxu0
    %1361 = vdwg.mxu0
    %v1362 = vadd.f32 %v1286, %v1359
    %v1363 = vxor.u32 %v1362, 2147483648
    %v1364 = vmul.f32 %v1363, 1.442695
    %v1365 = vpow.pop %v1364
    %v1366 = vadd.f32 %v1365, 1.0
    %v1367 = vrcp.pop %v1366
    %v1368 = vmul.f32 1.0, %v1367
    %v1369 = vtanh.pop %v1362
    %v1370 = vmul.f32 %v1368, %v1278
    %1372 = vrot.lane.b32.xlu0 %v1369, 64
    %v1373 = vpop.permute.xlu0 %1372
    %v1375 = vmul.f32 %v1368, %v1373
    %1377 = vrot.lane.b32.xlu0 %v1375, 32
    %v1378 = vpop.permute.xlu0 %1377
    %v1380 = vadd.f32 %v1370, %v1378
    %v1381 = vtanh.pop %v1380
    %1383 = vrot.lane.b32.xlu0 %v1381, 64
    %v1384 = vpop.permute.xlu0 %1383
    %v1386 = vmul.f32 %v1368, %v1384
    %s1387 = scalar_lea.vmem [#allocation2], 104
    %v1388 = vld [vmem:[%s1387] sm:$0xff]
    %1390 = vrot.lane.b32.xlu0 %v1386, 32
    %v1391 = vpop.permute.xlu0 %1390
    %v1392 = vsel %vm64, %v1391, 0
    %1394 = vmatprep.subr.mxu0 0.0
    %1395 = vmatpush1.msra.mxu0 0.0
    %1396 = vmatprep.subr.mxu0 0.0
    %1397 = vmatpush1.msra.mxu0 0.0
    %1398 = vmatprep.subr.mxu0 0.0
    %1399 = vmatpush1.msra.mxu0 0.0
    %1400 = vmatprep.subr.mxu0 0.0
    %1401 = vmatpush1.msra.mxu0 0.0
    %1402 = vmatprep.subr.mxu0 0.0
    %1403 = vmatpush1.msra.mxu0 0.0
    %1404 = vmatprep.subr.mxu0 0.0
    %1405 = vmatpush1.msra.mxu0 0.0
    %1406 = vmatprep.subr.mxu0 0.0
    %1407 = vmatpush1.msra.mxu0 0.0
    %1408 = vmatprep.subr.mxu0 0.0
    %1409 = vmatpush1.msra.mxu0 0.0
    %1410 = vmatprep.subr.mxu0 0.0
    %1411 = vmatpush1.msra.mxu0 0.0
    %1412 = vmatprep.subr.mxu0 0.0
    %1413 = vmatpush1.msra.mxu0 0.0
    %1414 = vmatprep.subr.mxu0 0.0
    %1415 = vmatpush1.msra.mxu0 0.0
    %1416 = vmatprep.subr.mxu0 0.0
    %1417 = vmatpush1.msra.mxu0 0.0
    %1418 = vmatprep.subr.mxu0 0.0
    %1419 = vmatpush1.msra.mxu0 %v62
    %1420 = vmatprep.subr.mxu0 0.0
    %1421 = vmatpush1.msra.mxu0 %v61
    %1422 = vmatprep.subr.mxu0 0.0
    %1423 = vmatpush1.msra.mxu0 %v60
    %1424 = vmatprep.subr.mxu0 0.0
    %1425 = vmatpush1.msra.mxu0 %v59
    %1426 = vmatprep.subr.mxu0 0.0
    %1427 = vmatpush2.msra.mxu0 0.0
    %1428 = vmatprep.subr.mxu0 0.0
    %1429 = vmatpush2.msra.mxu0 0.0
    %1430 = vmatprep.subr.mxu0 0.0
    %1431 = vmatpush2.msra.mxu0 0.0
    %1432 = vmatprep.subr.mxu0 0.0
    %1433 = vmatpush2.msra.mxu0 0.0
    %1434 = vmatprep.subr.mxu0 0.0
    %1435 = vmatpush2.msra.mxu0 0.0
    %1436 = vmatprep.subr.mxu0 0.0
    %1437 = vmatpush2.msra.mxu0 0.0
    %1438 = vmatprep.subr.mxu0 0.0
    %1439 = vmatpush2.msra.mxu0 0.0
    %1440 = vmatprep.subr.mxu0 0.0
    %1441 = vmatpush2.msra.mxu0 0.0
    %1442 = vmatprep.subr.mxu0 0.0
    %1443 = vmatpush2.msra.mxu0 0.0
    %1444 = vmatprep.subr.mxu0 0.0
    %1445 = vmatpush2.msra.mxu0 0.0
    %1446 = vmatprep.subr.mxu0 0.0
    %1447 = vmatpush2.msra.mxu0 0.0
    %1448 = vmatprep.subr.mxu0 0.0
    %1449 = vmatpush2.msra.mxu0 0.0
    %1450 = vmatprep.subr.mxu0 0.0
    %1451 = vmatpush2.msra.mxu0 0.0
    %1452 = vmatprep.subr.mxu0 0.0
    %1453 = vmatpush2.msra.mxu0 0.0
    %1454 = vmatprep.subr.mxu0 0.0
    %1455 = vmatpush2.msra.mxu0 0.0
    %1456 = vmatprep.subr.mxu0 0.0
    %1457 = vmatpush2.msra.mxu0 0.0
    %1458 = vmatprep.mubr.f32.mxu0 0.0
    %1459 = vmatmul.mubr.f32.gmra.mxu0 %v1392
    %v1460 = vpop.f32.mrf.mxu0
    %v1461 = vadd.f32 0.0, %v1460
    %v1462 = vpop.f32.mrf.mxu0
    %1463 = vdwg.mxu0
    %v1464 = vadd.f32 %v1388, %v1461
    %v1465 = vxor.u32 %v1464, 2147483648
    %v1466 = vmul.f32 %v1465, 1.442695
    %v1467 = vpow.pop %v1466
    %v1468 = vadd.f32 %v1467, 1.0
    %v1469 = vrcp.pop %v1468
    %v1470 = vmul.f32 1.0, %v1469
    %v1471 = vtanh.pop %v1464
    %v1472 = vmul.f32 %v1470, %v1380
    %1474 = vrot.lane.b32.xlu0 %v1471, 64
    %v1475 = vpop.permute.xlu0 %1474
    %v1477 = vmul.f32 %v1470, %v1475
    %1479 = vrot.lane.b32.xlu0 %v1477, 32
    %v1480 = vpop.permute.xlu0 %1479
    %v1482 = vadd.f32 %v1472, %v1480
    %v1483 = vtanh.pop %v1482
    %1485 = vrot.lane.b32.xlu0 %v1483, 64
    %v1486 = vpop.permute.xlu0 %1485
    %v1488 = vmul.f32 %v1470, %v1486
    %s1489 = scalar_lea.vmem [#allocation2], 112
    %v1490 = vld [vmem:[%s1489] sm:$0xff]
    %1492 = vrot.lane.b32.xlu0 %v1488, 32
    %v1493 = vpop.permute.xlu0 %1492
    %v1494 = vsel %vm64, %v1493, 0
    %1496 = vmatprep.subr.mxu0 0.0
    %1497 = vmatpush1.msra.mxu0 0.0
    %1498 = vmatprep.subr.mxu0 0.0
    %1499 = vmatpush1.msra.mxu0 0.0
    %1500 = vmatprep.subr.mxu0 0.0
    %1501 = vmatpush1.msra.mxu0 0.0
    %1502 = vmatprep.subr.mxu0 0.0
    %1503 = vmatpush1.msra.mxu0 0.0
    %1504 = vmatprep.subr.mxu0 0.0
    %1505 = vmatpush1.msra.mxu0 0.0
    %1506 = vmatprep.subr.mxu0 0.0
    %1507 = vmatpush1.msra.mxu0 0.0
    %1508 = vmatprep.subr.mxu0 0.0
    %1509 = vmatpush1.msra.mxu0 0.0
    %1510 = vmatprep.subr.mxu0 0.0
    %1511 = vmatpush1.msra.mxu0 0.0
    %1512 = vmatprep.subr.mxu0 0.0
    %1513 = vmatpush1.msra.mxu0 0.0
    %1514 = vmatprep.subr.mxu0 0.0
    %1515 = vmatpush1.msra.mxu0 0.0
    %1516 = vmatprep.subr.mxu0 0.0
    %1517 = vmatpush1.msra.mxu0 0.0
    %1518 = vmatprep.subr.mxu0 0.0
    %1519 = vmatpush1.msra.mxu0 0.0
    %1520 = vmatprep.subr.mxu0 0.0
    %1521 = vmatpush1.msra.mxu0 %v62
    %1522 = vmatprep.subr.mxu0 0.0
    %1523 = vmatpush1.msra.mxu0 %v61
    %1524 = vmatprep.subr.mxu0 0.0
    %1525 = vmatpush1.msra.mxu0 %v60
    %1526 = vmatprep.subr.mxu0 0.0
    %1527 = vmatpush1.msra.mxu0 %v59
    %1528 = vmatprep.subr.mxu0 0.0
    %1529 = vmatpush2.msra.mxu0 0.0
    %1530 = vmatprep.subr.mxu0 0.0
    %1531 = vmatpush2.msra.mxu0 0.0
    %1532 = vmatprep.subr.mxu0 0.0
    %1533 = vmatpush2.msra.mxu0 0.0
    %1534 = vmatprep.subr.mxu0 0.0
    %1535 = vmatpush2.msra.mxu0 0.0
    %1536 = vmatprep.subr.mxu0 0.0
    %1537 = vmatpush2.msra.mxu0 0.0
    %1538 = vmatprep.subr.mxu0 0.0
    %1539 = vmatpush2.msra.mxu0 0.0
    %1540 = vmatprep.subr.mxu0 0.0
    %1541 = vmatpush2.msra.mxu0 0.0
    %1542 = vmatprep.subr.mxu0 0.0
    %1543 = vmatpush2.msra.mxu0 0.0
    %1544 = vmatprep.subr.mxu0 0.0
    %1545 = vmatpush2.msra.mxu0 0.0
    %1546 = vmatprep.subr.mxu0 0.0
    %1547 = vmatpush2.msra.mxu0 0.0
    %1548 = vmatprep.subr.mxu0 0.0
    %1549 = vmatpush2.msra.mxu0 0.0
    %1550 = vmatprep.subr.mxu0 0.0
    %1551 = vmatpush2.msra.mxu0 0.0
    %1552 = vmatprep.subr.mxu0 0.0
    %1553 = vmatpush2.msra.mxu0 0.0
    %1554 = vmatprep.subr.mxu0 0.0
    %1555 = vmatpush2.msra.mxu0 0.0
    %1556 = vmatprep.subr.mxu0 0.0
    %1557 = vmatpush2.msra.mxu0 0.0
    %1558 = vmatprep.subr.mxu0 0.0
    %1559 = vmatpush2.msra.mxu0 0.0
    %1560 = vmatprep.mubr.f32.mxu0 0.0
    %1561 = vmatmul.mubr.f32.gmra.mxu0 %v1494
    %v1562 = vpop.f32.mrf.mxu0
    %v1563 = vadd.f32 0.0, %v1562
    %v1564 = vpop.f32.mrf.mxu0
    %1565 = vdwg.mxu0
    %v1566 = vadd.f32 %v1490, %v1563
    %v1567 = vxor.u32 %v1566, 2147483648
    %v1568 = vmul.f32 %v1567, 1.442695
    %v1569 = vpow.pop %v1568
    %v1570 = vadd.f32 %v1569, 1.0
    %v1571 = vrcp.pop %v1570
    %v1572 = vmul.f32 1.0, %v1571
    %v1573 = vtanh.pop %v1566
    %v1574 = vmul.f32 %v1572, %v1482
    %1576 = vrot.lane.b32.xlu0 %v1573, 64
    %v1577 = vpop.permute.xlu0 %1576
    %v1579 = vmul.f32 %v1572, %v1577
    %1581 = vrot.lane.b32.xlu0 %v1579, 32
    %v1582 = vpop.permute.xlu0 %1581
    %v1584 = vadd.f32 %v1574, %v1582
    %v1585 = vtanh.pop %v1584
    %1587 = vrot.lane.b32.xlu0 %v1585, 64
    %v1588 = vpop.permute.xlu0 %1587
    %v1590 = vmul.f32 %v1572, %v1588
    %s1591 = scalar_lea.vmem [#allocation2], 120
    %v1592 = vld [vmem:[%s1591] sm:$0xff]
    %1594 = vrot.lane.b32.xlu0 %v1590, 32
    %v1595 = vpop.permute.xlu0 %1594
    %v1596 = vsel %vm64, %v1595, 0
    %1598 = vmatprep.subr.mxu0 0.0
    %1599 = vmatpush1.msra.mxu0 0.0
    %1600 = vmatprep.subr.mxu0 0.0
    %1601 = vmatpush1.msra.mxu0 0.0
    %1602 = vmatprep.subr.mxu0 0.0
    %1603 = vmatpush1.msra.mxu0 0.0
    %1604 = vmatprep.subr.mxu0 0.0
    %1605 = vmatpush1.msra.mxu0 0.0
    %1606 = vmatprep.subr.mxu0 0.0
    %1607 = vmatpush1.msra.mxu0 0.0
    %1608 = vmatprep.subr.mxu0 0.0
    %1609 = vmatpush1.msra.mxu0 0.0
    %1610 = vmatprep.subr.mxu0 0.0
    %1611 = vmatpush1.msra.mxu0 0.0
    %1612 = vmatprep.subr.mxu0 0.0
    %1613 = vmatpush1.msra.mxu0 0.0
    %1614 = vmatprep.subr.mxu0 0.0
    %1615 = vmatpush1.msra.mxu0 0.0
    %1616 = vmatprep.subr.mxu0 0.0
    %1617 = vmatpush1.msra.mxu0 0.0
    %1618 = vmatprep.subr.mxu0 0.0
    %1619 = vmatpush1.msra.mxu0 0.0
    %1620 = vmatprep.subr.mxu0 0.0
    %1621 = vmatpush1.msra.mxu0 0.0
    %1622 = vmatprep.subr.mxu0 0.0
    %1623 = vmatpush1.msra.mxu0 %v62
    %1624 = vmatprep.subr.mxu0 0.0
    %1625 = vmatpush1.msra.mxu0 %v61
    %1626 = vmatprep.subr.mxu0 0.0
    %1627 = vmatpush1.msra.mxu0 %v60
    %1628 = vmatprep.subr.mxu0 0.0
    %1629 = vmatpush1.msra.mxu0 %v59
    %1630 = vmatprep.subr.mxu0 0.0
    %1631 = vmatpush2.msra.mxu0 0.0
    %1632 = vmatprep.subr.mxu0 0.0
    %1633 = vmatpush2.msra.mxu0 0.0
    %1634 = vmatprep.subr.mxu0 0.0
    %1635 = vmatpush2.msra.mxu0 0.0
    %1636 = vmatprep.subr.mxu0 0.0
    %1637 = vmatpush2.msra.mxu0 0.0
    %1638 = vmatprep.subr.mxu0 0.0
    %1639 = vmatpush2.msra.mxu0 0.0
    %1640 = vmatprep.subr.mxu0 0.0
    %1641 = vmatpush2.msra.mxu0 0.0
    %1642 = vmatprep.subr.mxu0 0.0
    %1643 = vmatpush2.msra.mxu0 0.0
    %1644 = vmatprep.subr.mxu0 0.0
    %1645 = vmatpush2.msra.mxu0 0.0
    %1646 = vmatprep.subr.mxu0 0.0
    %1647 = vmatpush2.msra.mxu0 0.0
    %1648 = vmatprep.subr.mxu0 0.0
    %1649 = vmatpush2.msra.mxu0 0.0
    %1650 = vmatprep.subr.mxu0 0.0
    %1651 = vmatpush2.msra.mxu0 0.0
    %1652 = vmatprep.subr.mxu0 0.0
    %1653 = vmatpush2.msra.mxu0 0.0
    %1654 = vmatprep.subr.mxu0 0.0
    %1655 = vmatpush2.msra.mxu0 0.0
    %1656 = vmatprep.subr.mxu0 0.0
    %1657 = vmatpush2.msra.mxu0 0.0
    %1658 = vmatprep.subr.mxu0 0.0
    %1659 = vmatpush2.msra.mxu0 0.0
    %1660 = vmatprep.subr.mxu0 0.0
    %1661 = vmatpush2.msra.mxu0 0.0
    %1662 = vmatprep.mubr.f32.mxu0 0.0
    %1663 = vmatmul.mubr.f32.gmra.mxu0 %v1596
    %v1664 = vpop.f32.mrf.mxu0
    %v1665 = vadd.f32 0.0, %v1664
    %v1666 = vpop.f32.mrf.mxu0
    %1667 = vdwg.mxu0
    %v1668 = vadd.f32 %v1592, %v1665
    %v1669 = vxor.u32 %v1668, 2147483648
    %v1670 = vmul.f32 %v1669, 1.442695
    %v1671 = vpow.pop %v1670
    %v1672 = vadd.f32 %v1671, 1.0
    %v1673 = vrcp.pop %v1672
    %v1674 = vmul.f32 1.0, %v1673
    %v1675 = vtanh.pop %v1668
    %v1676 = vmul.f32 %v1674, %v1584
    %1678 = vrot.lane.b32.xlu0 %v1675, 64
    %v1679 = vpop.permute.xlu0 %1678
    %v1681 = vmul.f32 %v1674, %v1679
    %1683 = vrot.lane.b32.xlu0 %v1681, 32
    %v1684 = vpop.permute.xlu0 %1683
    %v1686 = vadd.f32 %v1676, %v1684
    %v1687 = vtanh.pop %v1686
    %1689 = vrot.lane.b32.xlu0 %v1687, 64
    %v1690 = vpop.permute.xlu0 %1689
    %v1692 = vmul.f32 %v1674, %v1690
    %v1693 = vld [vmem:[#allocation7] sm:$0xff]
    %v1694 = vld [vmem:[#allocation7 + $0x8] sm:$0xff]
    %v1695 = vld [vmem:[#allocation7 + $0x10] sm:$0xff]
    %v1696 = vld [vmem:[#allocation7 + $0x18] sm:$0xff]
    %v1697 = vld [vmem:[%s3] sm:$0x1]
    %v1699 = vlaneseq
    %v1700 = vshrl.u32 %v1699, 7
    %v1701 = vsub.s32 0, %v1700
    %v1702 = vrot.slane %v1697, %v1701
    %1705 = vrot.lane.b32.xlu0 %v1692, 32
    %v1706 = vpop.permute.xlu0 %1705
    %v1707 = vsel %vm64, %v1706, 0
    %1709 = vmatprep.subr.mxu0 0.0
    %1710 = vmatpush1.msra.mxu0 0.0
    %1711 = vmatprep.subr.mxu0 0.0
    %1712 = vmatpush1.msra.mxu0 0.0
    %1713 = vmatprep.subr.mxu0 0.0
    %1714 = vmatpush1.msra.mxu0 0.0
    %1715 = vmatprep.subr.mxu0 0.0
    %1716 = vmatpush1.msra.mxu0 0.0
    %1717 = vmatprep.subr.mxu0 0.0
    %1718 = vmatpush1.msra.mxu0 0.0
    %1719 = vmatprep.subr.mxu0 0.0
    %1720 = vmatpush1.msra.mxu0 0.0
    %1721 = vmatprep.subr.mxu0 0.0
    %1722 = vmatpush1.msra.mxu0 0.0
    %1723 = vmatprep.subr.mxu0 0.0
    %1724 = vmatpush1.msra.mxu0 0.0
    %1725 = vmatprep.subr.mxu0 0.0
    %1726 = vmatpush1.msra.mxu0 0.0
    %1727 = vmatprep.subr.mxu0 0.0
    %1728 = vmatpush1.msra.mxu0 0.0
    %1729 = vmatprep.subr.mxu0 0.0
    %1730 = vmatpush1.msra.mxu0 0.0
    %1731 = vmatprep.subr.mxu0 0.0
    %1732 = vmatpush1.msra.mxu0 0.0
    %1733 = vmatprep.subr.mxu0 0.0
    %1734 = vmatpush1.msra.mxu0 %v1696
    %1735 = vmatprep.subr.mxu0 0.0
    %1736 = vmatpush1.msra.mxu0 %v1695
    %1737 = vmatprep.subr.mxu0 0.0
    %1738 = vmatpush1.msra.mxu0 %v1694
    %1739 = vmatprep.subr.mxu0 0.0
    %1740 = vmatpush1.msra.mxu0 %v1693
    %1741 = vmatprep.subr.mxu0 0.0
    %1742 = vmatpush2.msra.mxu0 0.0
    %1743 = vmatprep.subr.mxu0 0.0
    %1744 = vmatpush2.msra.mxu0 0.0
    %1745 = vmatprep.subr.mxu0 0.0
    %1746 = vmatpush2.msra.mxu0 0.0
    %1747 = vmatprep.subr.mxu0 0.0
    %1748 = vmatpush2.msra.mxu0 0.0
    %1749 = vmatprep.subr.mxu0 0.0
    %1750 = vmatpush2.msra.mxu0 0.0
    %1751 = vmatprep.subr.mxu0 0.0
    %1752 = vmatpush2.msra.mxu0 0.0
    %1753 = vmatprep.subr.mxu0 0.0
    %1754 = vmatpush2.msra.mxu0 0.0
    %1755 = vmatprep.subr.mxu0 0.0
    %1756 = vmatpush2.msra.mxu0 0.0
    %1757 = vmatprep.subr.mxu0 0.0
    %1758 = vmatpush2.msra.mxu0 0.0
    %1759 = vmatprep.subr.mxu0 0.0
    %1760 = vmatpush2.msra.mxu0 0.0
    %1761 = vmatprep.subr.mxu0 0.0
    %1762 = vmatpush2.msra.mxu0 0.0
    %1763 = vmatprep.subr.mxu0 0.0
    %1764 = vmatpush2.msra.mxu0 0.0
    %1765 = vmatprep.subr.mxu0 0.0
    %1766 = vmatpush2.msra.mxu0 0.0
    %1767 = vmatprep.subr.mxu0 0.0
    %1768 = vmatpush2.msra.mxu0 0.0
    %1769 = vmatprep.subr.mxu0 0.0
    %1770 = vmatpush2.msra.mxu0 0.0
    %1771 = vmatprep.subr.mxu0 0.0
    %1772 = vmatpush2.msra.mxu0 0.0
    %1773 = vmatprep.mubr.f32.mxu0 0.0
    %1774 = vmatmul.mubr.f32.gmra.mxu0 %v1707
    %v1775 = vpop.f32.mrf.mxu0
    %v1776 = vadd.f32 %v1702, %v1775
    %v1777 = vpop.f32.mrf.mxu0
    %1778 = vdwg.mxu0
    %1779 = vst [vmem:[#allocation8] sm:$0xff] %v1776
    // Predicated region
    $region30: #{tpu_custom_call.1} parent=1 // pred_check
      _
    $region31: #{tpu_custom_call.1} parent=1 // pred_check_branch
      %1781 = sbr.rel (0) target = $region33
    $region32: #{tpu_custom_call.1} parent=1 // pred_region
      %s1783 = ssub.s32 128, 128
      %1784 = vsyncadd [#allocation4], %s1783
      %s1786 = sshll.u32 [#allocation8], 4
      %s1787 = int_to_ptr.vmem [resolvable:$true] %s1786
      %1789 = dma.vmem_to_hbm [thread:$0]  %s1787, 128, %s4, [#allocation4]
    $region33: #{tpu_custom_call.1} parent=1 // pred_fallthru
      _
    // Predicated region
    $region34: #{tpu_custom_call.1} parent=1 // pred_check
      _
    $region35: #{tpu_custom_call.1} parent=1 // pred_check_branch
      %1791 = sbr.rel (0) target = $region37
    $region36: #{tpu_custom_call.1} parent=1 // pred_region
      %1792 = dma.done [#allocation4], 128
    $region37: #{tpu_custom_call.1} parent=1 // pred_fallthru
      _
    %1793 = vsyncpa [#allocation3], 1
    %1794 = vsyncpa [#allocation6], 1
    %1795 = vsyncpa [#allocation4], 1

</llo_original>
